<compile_context>
chip_gen: v5e
topology: v5e:2x2
jax: 0.10.0
libtpu: 0.0.40
codegen_flags: <defaults>
</compile_context>

<pallas_src>
import math

import numpy as np
import jax
import jax.numpy as jnp
from jax import lax
from jax.experimental import pallas as pl
from jax.experimental.pallas import tpu as pltpu  # noqa: F401

# ---------------- model hyper-parameters (small, consistent with the module) -------------
B = 2          # batch
S = 8          # seq_len
E = 32         # embedding_sz
NH = 4         # n_heads
DK = 8         # d_k
DV = 8         # d_v (== d_k, required by the torch .view on the w_v path)
H = 64         # hidden_sz of the position-wise feed forward
RPH = S // NH  # rows-per-head produced by the buggy .view(b, s, -1)
EPS = 1e-5

_QO = 0                            # lane offset of Q block in the fused projection
_KO = NH * DK                      # lane offset of K block
_VO = 2 * NH * DK                  # lane offset of V-wide block
_PW = 2 * NH * DK + NH * NH * DV   # fused projection width = 192

# ---- constant 0/1 matrices that realise the torch .view(b, s, -1) scramble ---------------
# Mask[i, u*DV+d]  = 1  iff  u == i % NH
# Crow[h, s', i]   = 1  iff  s' // RPH == h  and  i // NH == s' % RPH
_rows = np.arange(S)
_cols = np.arange(NH * DV)
_MASK = (_cols[None, :] // DV == _rows[:, None] % NH).astype(np.float32)        # (S, NH*DV)
_sp = np.arange(S)[:, None]
_ii = np.arange(S)[None, :]
_CROW = np.stack(
    [((_sp // RPH == h) & (_ii // NH == _sp % RPH)).astype(np.float32) for h in range(NH)],
    axis=0)                                                                      # (NH, S, S)
_CROWB = np.ascontiguousarray(np.broadcast_to(_CROW[:, None], (NH, B, S, S)))    # (NH,B,S,S)


def _layer_norm(x, gamma, beta):
    mu = jnp.mean(x, axis=-1, keepdims=True)
    var = jnp.mean((x - mu) ** 2, axis=-1, keepdims=True)
    return (x - mu) * lax.rsqrt(var + EPS) * gamma + beta


# ------------------------------------ Pallas kernel --------------------------------------
def encoder_layer_kernel(x_ref, pe_ref, wall_ref, fcw_ref,
                         l1w_ref, l1b_ref, l2w_ref, l2b_ref,
                         lng_ref, lnb_ref, ln1g_ref, ln1b_ref,
                         mask_ref, crow_ref,
                         out_ref):
    # ---- positional encoding; flatten (B, S, E) -> (B*S, E) for all dense matmuls ----
    pos3 = x_ref[...] + pe_ref[...]                      # (B, S, E), pe broadcast over batch
    pos2 = pos3.reshape(B * S, E)

    # ---- fused Q | K | V-wide projection: one MXU matmul ----
    proj2 = jnp.dot(pos2, wall_ref[...], preferred_element_type=jnp.float32)   # (B*S, 192)
    proj3 = proj2.reshape(B, S, _PW)

    inv_sqrt_dk = 1.0 / math.sqrt(DK)
    mask = mask_ref[...]                                 # (S, NH*DV)

    # scrambled attention output, already in the torch .view(b, s, -1) row/col layout
    scr = jnp.zeros((B, S, NH * DV), jnp.float32)
    for h in range(NH):
        qh = proj3[:, :, _QO + h * DK:_QO + (h + 1) * DK]              # (B, S, DK)
        kh = proj3[:, :, _KO + h * DK:_KO + (h + 1) * DK]              # (B, S, DK)
        vw = proj3[:, :, _VO + h * NH * DV:_VO + (h + 1) * NH * DV]    # (B, S, NH*DV)

        # argument-swap quirk: scores = (K / sqrt(d_k)) @ Q^T
        scores = jnp.einsum("bid,bjd->bij", kh * inv_sqrt_dk, qh,
                            preferred_element_type=jnp.float32)        # (B, S, S)
        scores = scores - jnp.max(scores, axis=-1, keepdims=True)
        ex = jnp.exp(scores)
        attn = ex * pl.reciprocal(jnp.sum(ex, axis=-1, keepdims=True), approx=True)

        # attn @ V (each DV-wide block of vw is an identical copy of V_h)
        xw = jnp.einsum("bij,bjc->bic", attn, vw,
                        preferred_element_type=jnp.float32)            # (B, S, NH*DV)
        # keep column block u only for rows i with i % NH == u, then group-sum blocks of
        # NH consecutive rows and place them into this head's RPH output rows
        # -> exact torch .view(b, s, -1) scramble, expressed as constant-matrix matmuls.
        scr = scr + jnp.einsum("bsi,bic->bsc", crow_ref[h], xw * mask,
                               preferred_element_type=jnp.float32)

    # ---- output projection (fc) ----
    attn_out = jnp.dot(scr.reshape(B * S, NH * DV), fcw_ref[...],
                       preferred_element_type=jnp.float32)             # (B*S, E)

    # ---- residual + layer norm ----
    added = pos2 + attn_out
    ln = _layer_norm(added, lng_ref[...], lnb_ref[...])

    # ---- position-wise feed forward (no activation, per the module) ----
    h1 = jnp.dot(ln, l1w_ref[...], preferred_element_type=jnp.float32) + l1b_ref[...]
    ff = jnp.dot(h1, l2w_ref[...], preferred_element_type=jnp.float32) + l2b_ref[...]

    # ---- residual + layer norm ----
    added1 = ff + ln
    out2 = _layer_norm(added1, ln1g_ref[...], ln1b_ref[...])
    out_ref[...] = out2.reshape(B, S, E)


# ------------------------------------ wrapper ---------------------------------------------
@jax.jit
def encoder_layer(x, pe, wq, wk, wv, fcw, l1w, l1b, l2w, l2b, lng, lnb, ln1g, ln1b):
    # Fuse Q|K|V weights; V is widened so each head's V projection comes out already tiled
    # NH times along the lane axis (needed by the scramble-as-matmul trick). Pure XLA, tiny.
    wv_h = wv.reshape(E, NH, DV)
    wv_wide = jnp.broadcast_to(wv_h[:, :, None, :],
                               (E, NH, NH, DV)).reshape(E, NH * NH * DV)
    w_all = jnp.concatenate([wq, wk, wv_wide], axis=1)                 # (E, 192)

    mask = jnp.asarray(_MASK)
    crow = jnp.asarray(_CROWB)

    # Single gridless invocation: all operands (< 64 KiB total) live in VMEM.
    # TODO(synk): output last dim is 32 (< 128 lanes); a lane-dense (B, S*E) out layout
    # would need a non-trivial in-kernel relayout and is skipped at this tiny size.
    return pl.pallas_call(
        encoder_layer_kernel,
        out_shape=jax.ShapeDtypeStruct((B, S, E), jnp.float32),
    )(x, pe, w_all, fcw, l1w, l1b, l2w, l2b, lng, lnb, ln1g, ln1b, mask, crow)


# ------------------------------- parameter / buffer setup ---------------------------------
def make_positional_encoding():
    position = jnp.arange(S, dtype=jnp.float32)[:, None]
    div_even = jnp.power(10000.0, jnp.arange(0, E, 2, dtype=jnp.float32) / E)
    div_odd = jnp.power(10000.0, jnp.arange(1, E, 2, dtype=jnp.float32) / E)
    pe = jnp.zeros((S, E), jnp.float32)
    pe = pe.at[:, 0::2].set(jnp.sin(position / div_even))
    pe = pe.at[:, 1::2].set(jnp.cos(position / div_odd))
    return pe


def init_params(key):
    ks = jax.random.split(key, 8)
    scale = 0.1
    return dict(
        pe=make_positional_encoding(),
        wq=jax.random.normal(ks[0], (E, NH * DK), jnp.float32) * scale,
        wk=jax.random.normal(ks[1], (E, NH * DK), jnp.float32) * scale,
        wv=jax.random.normal(ks[2], (E, NH * DK), jnp.float32) * scale,
        fcw=jax.random.normal(ks[3], (NH * DV, E), jnp.float32) * scale,
        l1w=jax.random.normal(ks[4], (E, H), jnp.float32) * scale,
        l1b=jax.random.normal(ks[5], (1, H), jnp.float32) * scale,
        l2w=jax.random.normal(ks[6], (H, E), jnp.float32) * scale,
        l2b=jax.random.normal(ks[7], (1, E), jnp.float32) * scale,
        lng=jnp.ones((1, E), jnp.float32),
        lnb=jnp.zeros((1, E), jnp.float32),
        ln1g=jnp.ones((1, E), jnp.float32),
        ln1b=jnp.zeros((1, E), jnp.float32),
    )


# --------------------------------- pure-JAX reference -------------------------------------
def ref_forward(x, p):
    prec = lax.Precision.HIGHEST
    pos = x + p["pe"][None]
    qp = jnp.einsum("bse,ef->bsf", pos, p["wq"], precision=prec)
    kp = jnp.einsum("bse,ef->bsf", pos, p["wk"], precision=prec)
    vp = jnp.einsum("bse,ef->bsf", pos, p["wv"], precision=prec)
    q = qp.reshape(B, S, NH, DK).transpose(0, 2, 1, 3)
    k = kp.reshape(B, S, NH, DK).transpose(0, 2, 1, 3)
    v = vp.reshape(B, S, NH, DV).transpose(0, 2, 1, 3)
    # argument-swap quirk: scores = (K / sqrt(dk)) @ Q^T
    scores = jnp.einsum("bhid,bhjd->bhij", k / math.sqrt(DK), q, precision=prec)
    attn = jax.nn.softmax(scores, axis=-1)
    out = jnp.einsum("bhij,bhjd->bhid", attn, v, precision=prec)
    out = out.reshape(B, S, NH * DV)          # mimics torch .view(b, s, -1) on (B,NH,S,DV)
    attn_out = jnp.einsum("bsc,ce->bse", out, p["fcw"], precision=prec)
    added = pos + attn_out
    ln = _layer_norm(added, p["lng"], p["lnb"])
    h1 = jnp.einsum("bse,eh->bsh", ln, p["l1w"], precision=prec) + p["l1b"]
    ff = jnp.einsum("bsh,he->bse", h1, p["l2w"], precision=prec) + p["l2b"]
    added1 = ff + ln
    return _layer_norm(added1, p["ln1g"], p["ln1b"])


# ----------------------------------------- main -------------------------------------------
if __name__ == "__main__":
    key = jax.random.PRNGKey(0)
    kx, kp = jax.random.split(key)
    x = jax.random.normal(kx, (B, S, E), jnp.float32)
    p = init_params(kp)

    out = encoder_layer(x, p["pe"], p["wq"], p["wk"], p["wv"], p["fcw"],
                        p["l1w"], p["l1b"], p["l2w"], p["l2b"],
                        p["lng"], p["lnb"], p["ln1g"], p["ln1b"])
    out = jax.block_until_ready(out)

    ref = ref_forward(x, p)
    assert out.shape == (B, S, E)
    max_diff = jnp.max(jnp.abs(out - ref))
    # kernel uses default MXU precision (bf16 passes) vs. a HIGHEST-precision reference;
    # genuine layout/scramble bugs produce O(0.3+) errors, well above this tolerance.
    assert jnp.allclose(out, ref, atol=2e-2, rtol=2e-2), f"max abs diff = {max_diff}"

    print("KERNEL_OK")
</pallas_src>

<mosaic_0001>
module attributes {stable_mosaic.version = 11 : i64} {
  func.func @encoder_layer_kernel(%arg0: memref<2x8x32xf32, #tpu.memory_space<vmem>>, %arg1: memref<8x32xf32, #tpu.memory_space<vmem>>, %arg2: memref<32x192xf32, #tpu.memory_space<vmem>>, %arg3: memref<32x32xf32, #tpu.memory_space<vmem>>, %arg4: memref<32x64xf32, #tpu.memory_space<vmem>>, %arg5: memref<1x64xf32, #tpu.memory_space<vmem>>, %arg6: memref<64x32xf32, #tpu.memory_space<vmem>>, %arg7: memref<1x32xf32, #tpu.memory_space<vmem>>, %arg8: memref<1x32xf32, #tpu.memory_space<vmem>>, %arg9: memref<1x32xf32, #tpu.memory_space<vmem>>, %arg10: memref<1x32xf32, #tpu.memory_space<vmem>>, %arg11: memref<1x32xf32, #tpu.memory_space<vmem>>, %arg12: memref<8x32xf32, #tpu.memory_space<vmem>>, %arg13: memref<4x2x8x8xf32, #tpu.memory_space<vmem>>, %arg14: memref<2x8x32xf32, #tpu.memory_space<vmem>>) attributes {dimension_semantics = [], scalar_prefetch = 0 : i64, scratch_operands = 0 : i64, tpu.core_type = #tpu.core_type<tc>} {
    %c0 = arith.constant 0 : index
    %c0_0 = arith.constant 0 : index
    %c0_1 = arith.constant 0 : index
    %0 = vector.load %arg0[%c0, %c0_0, %c0_1] : memref<2x8x32xf32, #tpu.memory_space<vmem>>, vector<2x8x32xf32>
    %c0_2 = arith.constant 0 : index
    %c0_3 = arith.constant 0 : index
    %1 = vector.load %arg1[%c0_2, %c0_3] : memref<8x32xf32, #tpu.memory_space<vmem>>, vector<8x32xf32>
    %2 = vector.shape_cast %1 : vector<8x32xf32> to vector<1x8x32xf32>
    %3 = vector.broadcast %2 : vector<1x8x32xf32> to vector<2x8x32xf32>
    %4 = arith.addf %0, %3 : vector<2x8x32xf32>
    %5 = vector.shape_cast %4 : vector<2x8x32xf32> to vector<16x32xf32>
    %c0_4 = arith.constant 0 : index
    %c0_5 = arith.constant 0 : index
    %6 = vector.load %arg2[%c0_4, %c0_5] : memref<32x192xf32, #tpu.memory_space<vmem>>, vector<32x192xf32>
    %cst = arith.constant dense<0.000000e+00> : vector<16x192xf32>
    %7 = tpu.matmul %5, %6, %cst {dimension_numbers = #tpu.dot_dimension_numbers<[1], [0], [0], [1], [0, 0, 1, 1], [], []>} : vector<16x32xf32>, vector<32x192xf32>, vector<16x192xf32> -> vector<16x192xf32>
    %8 = vector.shape_cast %7 : vector<16x192xf32> to vector<2x8x192xf32>
    %c0_6 = arith.constant 0 : index
    %c0_7 = arith.constant 0 : index
    %9 = vector.load %arg12[%c0_6, %c0_7] : memref<8x32xf32, #tpu.memory_space<vmem>>, vector<8x32xf32>
    %cst_8 = arith.constant 0.000000e+00 : f32
    %10 = vector.broadcast %cst_8 : f32 to vector<2x8x32xf32>
    %11 = vector.extract_strided_slice %8 {offsets = [0, 0, 0], sizes = [2, 8, 8], strides = [1, 1, 1]} : vector<2x8x192xf32> to vector<2x8x8xf32>
    %12 = vector.extract_strided_slice %8 {offsets = [0, 0, 32], sizes = [2, 8, 8], strides = [1, 1, 1]} : vector<2x8x192xf32> to vector<2x8x8xf32>
    %13 = vector.extract_strided_slice %8 {offsets = [0, 0, 64], sizes = [2, 8, 32], strides = [1, 1, 1]} : vector<2x8x192xf32> to vector<2x8x32xf32>
    %cst_9 = arith.constant 0.353553385 : f32
    %14 = vector.broadcast %cst_9 : f32 to vector<2x8x8xf32>
    %15 = arith.mulf %12, %14 : vector<2x8x8xf32>
    "tpu.trace_start"() <{level = 10 : i32, message = "bid,bjd->bij"}> : () -> ()
    %cst_10 = arith.constant dense<0.000000e+00> : vector<2x8x8xf32>
    %16 = tpu.matmul %15, %11, %cst_10 {dimension_numbers = #tpu.dot_dimension_numbers<[2], [2], [1], [1], [0, 0, 0, 1, 1, 1], [0], [0]>} : vector<2x8x8xf32>, vector<2x8x8xf32>, vector<2x8x8xf32> -> vector<2x8x8xf32>
    "tpu.trace_stop"() : () -> ()
    %cst_11 = arith.constant dense<0xFF800000> : vector<2x8xf32>
    %17 = vector.multi_reduction <maximumf>, %16, %cst_11 [2] : vector<2x8x8xf32> to vector<2x8xf32>
    %18 = vector.shape_cast %17 : vector<2x8xf32> to vector<2x8x1xf32>
    %19 = vector.broadcast %18 : vector<2x8x1xf32> to vector<2x8x8xf32>
    %20 = arith.subf %16, %19 : vector<2x8x8xf32>
    %21 = math.exp %20 : vector<2x8x8xf32>
    %cst_12 = arith.constant dense<0.000000e+00> : vector<2x8xf32>
    %22 = vector.multi_reduction <add>, %21, %cst_12 [2] : vector<2x8x8xf32> to vector<2x8xf32>
    %23 = vector.shape_cast %22 : vector<2x8xf32> to vector<2x8x1xf32>
    %24 = tpu.reciprocal %23 {approx = true} : vector<2x8x1xf32> -> vector<2x8x1xf32>
    %25 = vector.broadcast %24 : vector<2x8x1xf32> to vector<2x8x8xf32>
    %26 = arith.mulf %21, %25 : vector<2x8x8xf32>
    "tpu.trace_start"() <{level = 10 : i32, message = "bij,bjc->bic"}> : () -> ()
    %cst_13 = arith.constant dense<0.000000e+00> : vector<2x8x32xf32>
    %27 = tpu.matmul %26, %13, %cst_13 {dimension_numbers = #tpu.dot_dimension_numbers<[2], [1], [1], [2], [0, 0, 0, 1, 1, 2], [0], [0]>} : vector<2x8x8xf32>, vector<2x8x32xf32>, vector<2x8x32xf32> -> vector<2x8x32xf32>
    "tpu.trace_stop"() : () -> ()
    %c0_14 = arith.constant 0 : index
    %c0_15 = arith.constant 0 : index
    %c0_16 = arith.constant 0 : index
    %c0_17 = arith.constant 0 : index
    %28 = vector.load %arg13[%c0_14, %c0_15, %c0_16, %c0_17] : memref<4x2x8x8xf32, #tpu.memory_space<vmem>>, vector<1x2x8x8xf32>
    %29 = vector.shape_cast %28 : vector<1x2x8x8xf32> to vector<2x8x8xf32>
    %30 = vector.shape_cast %9 : vector<8x32xf32> to vector<1x8x32xf32>
    %31 = vector.broadcast %30 : vector<1x8x32xf32> to vector<2x8x32xf32>
    %32 = arith.mulf %27, %31 : vector<2x8x32xf32>
    "tpu.trace_start"() <{level = 10 : i32, message = "bsi,bic->bsc"}> : () -> ()
    %cst_18 = arith.constant dense<0.000000e+00> : vector<2x8x32xf32>
    %33 = tpu.matmul %29, %32, %cst_18 {dimension_numbers = #tpu.dot_dimension_numbers<[2], [1], [1], [2], [0, 0, 0, 1, 1, 2], [0], [0]>} : vector<2x8x8xf32>, vector<2x8x32xf32>, vector<2x8x32xf32> -> vector<2x8x32xf32>
    "tpu.trace_stop"() : () -> ()
    %34 = arith.addf %10, %33 : vector<2x8x32xf32>
    %35 = vector.extract_strided_slice %8 {offsets = [0, 0, 8], sizes = [2, 8, 8], strides = [1, 1, 1]} : vector<2x8x192xf32> to vector<2x8x8xf32>
    %36 = vector.extract_strided_slice %8 {offsets = [0, 0, 40], sizes = [2, 8, 8], strides = [1, 1, 1]} : vector<2x8x192xf32> to vector<2x8x8xf32>
    %37 = vector.extract_strided_slice %8 {offsets = [0, 0, 96], sizes = [2, 8, 32], strides = [1, 1, 1]} : vector<2x8x192xf32> to vector<2x8x32xf32>
    %cst_19 = arith.constant 0.353553385 : f32
    %38 = vector.broadcast %cst_19 : f32 to vector<2x8x8xf32>
    %39 = arith.mulf %36, %38 : vector<2x8x8xf32>
    "tpu.trace_start"() <{level = 10 : i32, message = "bid,bjd->bij"}> : () -> ()
    %cst_20 = arith.constant dense<0.000000e+00> : vector<2x8x8xf32>
    %40 = tpu.matmul %39, %35, %cst_20 {dimension_numbers = #tpu.dot_dimension_numbers<[2], [2], [1], [1], [0, 0, 0, 1, 1, 1], [0], [0]>} : vector<2x8x8xf32>, vector<2x8x8xf32>, vector<2x8x8xf32> -> vector<2x8x8xf32>
    "tpu.trace_stop"() : () -> ()
    %cst_21 = arith.constant dense<0xFF800000> : vector<2x8xf32>
    %41 = vector.multi_reduction <maximumf>, %40, %cst_21 [2] : vector<2x8x8xf32> to vector<2x8xf32>
    %42 = vector.shape_cast %41 : vector<2x8xf32> to vector<2x8x1xf32>
    %43 = vector.broadcast %42 : vector<2x8x1xf32> to vector<2x8x8xf32>
    %44 = arith.subf %40, %43 : vector<2x8x8xf32>
    %45 = math.exp %44 : vector<2x8x8xf32>
    %cst_22 = arith.constant dense<0.000000e+00> : vector<2x8xf32>
    %46 = vector.multi_reduction <add>, %45, %cst_22 [2] : vector<2x8x8xf32> to vector<2x8xf32>
    %47 = vector.shape_cast %46 : vector<2x8xf32> to vector<2x8x1xf32>
    %48 = tpu.reciprocal %47 {approx = true} : vector<2x8x1xf32> -> vector<2x8x1xf32>
    %49 = vector.broadcast %48 : vector<2x8x1xf32> to vector<2x8x8xf32>
    %50 = arith.mulf %45, %49 : vector<2x8x8xf32>
    "tpu.trace_start"() <{level = 10 : i32, message = "bij,bjc->bic"}> : () -> ()
    %cst_23 = arith.constant dense<0.000000e+00> : vector<2x8x32xf32>
    %51 = tpu.matmul %50, %37, %cst_23 {dimension_numbers = #tpu.dot_dimension_numbers<[2], [1], [1], [2], [0, 0, 0, 1, 1, 2], [0], [0]>} : vector<2x8x8xf32>, vector<2x8x32xf32>, vector<2x8x32xf32> -> vector<2x8x32xf32>
    "tpu.trace_stop"() : () -> ()
    %c1 = arith.constant 1 : index
    %c0_24 = arith.constant 0 : index
    %c0_25 = arith.constant 0 : index
    %c0_26 = arith.constant 0 : index
    %52 = vector.load %arg13[%c1, %c0_24, %c0_25, %c0_26] : memref<4x2x8x8xf32, #tpu.memory_space<vmem>>, vector<1x2x8x8xf32>
    %53 = vector.shape_cast %52 : vector<1x2x8x8xf32> to vector<2x8x8xf32>
    %54 = vector.shape_cast %9 : vector<8x32xf32> to vector<1x8x32xf32>
    %55 = vector.broadcast %54 : vector<1x8x32xf32> to vector<2x8x32xf32>
    %56 = arith.mulf %51, %55 : vector<2x8x32xf32>
    "tpu.trace_start"() <{level = 10 : i32, message = "bsi,bic->bsc"}> : () -> ()
    %cst_27 = arith.constant dense<0.000000e+00> : vector<2x8x32xf32>
    %57 = tpu.matmul %53, %56, %cst_27 {dimension_numbers = #tpu.dot_dimension_numbers<[2], [1], [1], [2], [0, 0, 0, 1, 1, 2], [0], [0]>} : vector<2x8x8xf32>, vector<2x8x32xf32>, vector<2x8x32xf32> -> vector<2x8x32xf32>
    "tpu.trace_stop"() : () -> ()
    %58 = arith.addf %34, %57 : vector<2x8x32xf32>
    %59 = vector.extract_strided_slice %8 {offsets = [0, 0, 16], sizes = [2, 8, 8], strides = [1, 1, 1]} : vector<2x8x192xf32> to vector<2x8x8xf32>
    %60 = vector.extract_strided_slice %8 {offsets = [0, 0, 48], sizes = [2, 8, 8], strides = [1, 1, 1]} : vector<2x8x192xf32> to vector<2x8x8xf32>
    %61 = vector.extract_strided_slice %8 {offsets = [0, 0, 128], sizes = [2, 8, 32], strides = [1, 1, 1]} : vector<2x8x192xf32> to vector<2x8x32xf32>
    %cst_28 = arith.constant 0.353553385 : f32
    %62 = vector.broadcast %cst_28 : f32 to vector<2x8x8xf32>
    %63 = arith.mulf %60, %62 : vector<2x8x8xf32>
    "tpu.trace_start"() <{level = 10 : i32, message = "bid,bjd->bij"}> : () -> ()
    %cst_29 = arith.constant dense<0.000000e+00> : vector<2x8x8xf32>
    %64 = tpu.matmul %63, %59, %cst_29 {dimension_numbers = #tpu.dot_dimension_numbers<[2], [2], [1], [1], [0, 0, 0, 1, 1, 1], [0], [0]>} : vector<2x8x8xf32>, vector<2x8x8xf32>, vector<2x8x8xf32> -> vector<2x8x8xf32>
    "tpu.trace_stop"() : () -> ()
    %cst_30 = arith.constant dense<0xFF800000> : vector<2x8xf32>
    %65 = vector.multi_reduction <maximumf>, %64, %cst_30 [2] : vector<2x8x8xf32> to vector<2x8xf32>
    %66 = vector.shape_cast %65 : vector<2x8xf32> to vector<2x8x1xf32>
    %67 = vector.broadcast %66 : vector<2x8x1xf32> to vector<2x8x8xf32>
    %68 = arith.subf %64, %67 : vector<2x8x8xf32>
    %69 = math.exp %68 : vector<2x8x8xf32>
    %cst_31 = arith.constant dense<0.000000e+00> : vector<2x8xf32>
    %70 = vector.multi_reduction <add>, %69, %cst_31 [2] : vector<2x8x8xf32> to vector<2x8xf32>
    %71 = vector.shape_cast %70 : vector<2x8xf32> to vector<2x8x1xf32>
    %72 = tpu.reciprocal %71 {approx = true} : vector<2x8x1xf32> -> vector<2x8x1xf32>
    %73 = vector.broadcast %72 : vector<2x8x1xf32> to vector<2x8x8xf32>
    %74 = arith.mulf %69, %73 : vector<2x8x8xf32>
    "tpu.trace_start"() <{level = 10 : i32, message = "bij,bjc->bic"}> : () -> ()
    %cst_32 = arith.constant dense<0.000000e+00> : vector<2x8x32xf32>
    %75 = tpu.matmul %74, %61, %cst_32 {dimension_numbers = #tpu.dot_dimension_numbers<[2], [1], [1], [2], [0, 0, 0, 1, 1, 2], [0], [0]>} : vector<2x8x8xf32>, vector<2x8x32xf32>, vector<2x8x32xf32> -> vector<2x8x32xf32>
    "tpu.trace_stop"() : () -> ()
    %c2 = arith.constant 2 : index
    %c0_33 = arith.constant 0 : index
    %c0_34 = arith.constant 0 : index
    %c0_35 = arith.constant 0 : index
    %76 = vector.load %arg13[%c2, %c0_33, %c0_34, %c0_35] : memref<4x2x8x8xf32, #tpu.memory_space<vmem>>, vector<1x2x8x8xf32>
    %77 = vector.shape_cast %76 : vector<1x2x8x8xf32> to vector<2x8x8xf32>
    %78 = vector.shape_cast %9 : vector<8x32xf32> to vector<1x8x32xf32>
    %79 = vector.broadcast %78 : vector<1x8x32xf32> to vector<2x8x32xf32>
    %80 = arith.mulf %75, %79 : vector<2x8x32xf32>
    "tpu.trace_start"() <{level = 10 : i32, message = "bsi,bic->bsc"}> : () -> ()
    %cst_36 = arith.constant dense<0.000000e+00> : vector<2x8x32xf32>
    %81 = tpu.matmul %77, %80, %cst_36 {dimension_numbers = #tpu.dot_dimension_numbers<[2], [1], [1], [2], [0, 0, 0, 1, 1, 2], [0], [0]>} : vector<2x8x8xf32>, vector<2x8x32xf32>, vector<2x8x32xf32> -> vector<2x8x32xf32>
    "tpu.trace_stop"() : () -> ()
    %82 = arith.addf %58, %81 : vector<2x8x32xf32>
    %83 = vector.extract_strided_slice %8 {offsets = [0, 0, 24], sizes = [2, 8, 8], strides = [1, 1, 1]} : vector<2x8x192xf32> to vector<2x8x8xf32>
    %84 = vector.extract_strided_slice %8 {offsets = [0, 0, 56], sizes = [2, 8, 8], strides = [1, 1, 1]} : vector<2x8x192xf32> to vector<2x8x8xf32>
    %85 = vector.extract_strided_slice %8 {offsets = [0, 0, 160], sizes = [2, 8, 32], strides = [1, 1, 1]} : vector<2x8x192xf32> to vector<2x8x32xf32>
    %cst_37 = arith.constant 0.353553385 : f32
    %86 = vector.broadcast %cst_37 : f32 to vector<2x8x8xf32>
    %87 = arith.mulf %84, %86 : vector<2x8x8xf32>
    "tpu.trace_start"() <{level = 10 : i32, message = "bid,bjd->bij"}> : () -> ()
    %cst_38 = arith.constant dense<0.000000e+00> : vector<2x8x8xf32>
    %88 = tpu.matmul %87, %83, %cst_38 {dimension_numbers = #tpu.dot_dimension_numbers<[2], [2], [1], [1], [0, 0, 0, 1, 1, 1], [0], [0]>} : vector<2x8x8xf32>, vector<2x8x8xf32>, vector<2x8x8xf32> -> vector<2x8x8xf32>
    "tpu.trace_stop"() : () -> ()
    %cst_39 = arith.constant dense<0xFF800000> : vector<2x8xf32>
    %89 = vector.multi_reduction <maximumf>, %88, %cst_39 [2] : vector<2x8x8xf32> to vector<2x8xf32>
    %90 = vector.shape_cast %89 : vector<2x8xf32> to vector<2x8x1xf32>
    %91 = vector.broadcast %90 : vector<2x8x1xf32> to vector<2x8x8xf32>
    %92 = arith.subf %88, %91 : vector<2x8x8xf32>
    %93 = math.exp %92 : vector<2x8x8xf32>
    %cst_40 = arith.constant dense<0.000000e+00> : vector<2x8xf32>
    %94 = vector.multi_reduction <add>, %93, %cst_40 [2] : vector<2x8x8xf32> to vector<2x8xf32>
    %95 = vector.shape_cast %94 : vector<2x8xf32> to vector<2x8x1xf32>
    %96 = tpu.reciprocal %95 {approx = true} : vector<2x8x1xf32> -> vector<2x8x1xf32>
    %97 = vector.broadcast %96 : vector<2x8x1xf32> to vector<2x8x8xf32>
    %98 = arith.mulf %93, %97 : vector<2x8x8xf32>
    "tpu.trace_start"() <{level = 10 : i32, message = "bij,bjc->bic"}> : () -> ()
    %cst_41 = arith.constant dense<0.000000e+00> : vector<2x8x32xf32>
    %99 = tpu.matmul %98, %85, %cst_41 {dimension_numbers = #tpu.dot_dimension_numbers<[2], [1], [1], [2], [0, 0, 0, 1, 1, 2], [0], [0]>} : vector<2x8x8xf32>, vector<2x8x32xf32>, vector<2x8x32xf32> -> vector<2x8x32xf32>
    "tpu.trace_stop"() : () -> ()
    %c3 = arith.constant 3 : index
    %c0_42 = arith.constant 0 : index
    %c0_43 = arith.constant 0 : index
    %c0_44 = arith.constant 0 : index
    %100 = vector.load %arg13[%c3, %c0_42, %c0_43, %c0_44] : memref<4x2x8x8xf32, #tpu.memory_space<vmem>>, vector<1x2x8x8xf32>
    %101 = vector.shape_cast %100 : vector<1x2x8x8xf32> to vector<2x8x8xf32>
    %102 = vector.shape_cast %9 : vector<8x32xf32> to vector<1x8x32xf32>
    %103 = vector.broadcast %102 : vector<1x8x32xf32> to vector<2x8x32xf32>
    %104 = arith.mulf %99, %103 : vector<2x8x32xf32>
    "tpu.trace_start"() <{level = 10 : i32, message = "bsi,bic->bsc"}> : () -> ()
    %cst_45 = arith.constant dense<0.000000e+00> : vector<2x8x32xf32>
    %105 = tpu.matmul %101, %104, %cst_45 {dimension_numbers = #tpu.dot_dimension_numbers<[2], [1], [1], [2], [0, 0, 0, 1, 1, 2], [0], [0]>} : vector<2x8x8xf32>, vector<2x8x32xf32>, vector<2x8x32xf32> -> vector<2x8x32xf32>
    "tpu.trace_stop"() : () -> ()
    %106 = arith.addf %82, %105 : vector<2x8x32xf32>
    %107 = vector.shape_cast %106 : vector<2x8x32xf32> to vector<16x32xf32>
    %c0_46 = arith.constant 0 : index
    %c0_47 = arith.constant 0 : index
    %108 = vector.load %arg3[%c0_46, %c0_47] : memref<32x32xf32, #tpu.memory_space<vmem>>, vector<32x32xf32>
    %cst_48 = arith.constant dense<0.000000e+00> : vector<16x32xf32>
    %109 = tpu.matmul %107, %108, %cst_48 {dimension_numbers = #tpu.dot_dimension_numbers<[1], [0], [0], [1], [0, 0, 1, 1], [], []>} : vector<16x32xf32>, vector<32x32xf32>, vector<16x32xf32> -> vector<16x32xf32>
    %110 = arith.addf %5, %109 : vector<16x32xf32>
    %c0_49 = arith.constant 0 : index
    %c0_50 = arith.constant 0 : index
    %111 = vector.load %arg8[%c0_49, %c0_50] : memref<1x32xf32, #tpu.memory_space<vmem>>, vector<1x32xf32>
    %c0_51 = arith.constant 0 : index
    %c0_52 = arith.constant 0 : index
    %112 = vector.load %arg9[%c0_51, %c0_52] : memref<1x32xf32, #tpu.memory_space<vmem>>, vector<1x32xf32>
    %cst_53 = arith.constant dense<0.000000e+00> : vector<16xf32>
    %113 = vector.multi_reduction <add>, %110, %cst_53 [1] : vector<16x32xf32> to vector<16xf32>
    %114 = vector.shape_cast %113 : vector<16xf32> to vector<16x1xf32>
    %cst_54 = arith.constant 3.200000e+01 : f32
    %115 = vector.broadcast %cst_54 : f32 to vector<16x1xf32>
    %116 = arith.divf %114, %115 : vector<16x1xf32>
    %117 = vector.broadcast %116 : vector<16x1xf32> to vector<16x32xf32>
    %118 = arith.subf %110, %117 : vector<16x32xf32>
    %119 = arith.mulf %118, %118 : vector<16x32xf32>
    %cst_55 = arith.constant dense<0.000000e+00> : vector<16xf32>
    %120 = vector.multi_reduction <add>, %119, %cst_55 [1] : vector<16x32xf32> to vector<16xf32>
    %121 = vector.shape_cast %120 : vector<16xf32> to vector<16x1xf32>
    %cst_56 = arith.constant 3.200000e+01 : f32
    %122 = vector.broadcast %cst_56 : f32 to vector<16x1xf32>
    %123 = arith.divf %121, %122 : vector<16x1xf32>
    %124 = vector.broadcast %116 : vector<16x1xf32> to vector<16x32xf32>
    %125 = arith.subf %110, %124 : vector<16x32xf32>
    %cst_57 = arith.constant 9.99999974E-6 : f32
    %126 = vector.broadcast %cst_57 : f32 to vector<16x1xf32>
    %127 = arith.addf %123, %126 : vector<16x1xf32>
    %128 = math.rsqrt %127 : vector<16x1xf32>
    %129 = vector.broadcast %128 : vector<16x1xf32> to vector<16x32xf32>
    %130 = arith.mulf %125, %129 : vector<16x32xf32>
    %131 = vector.broadcast %111 : vector<1x32xf32> to vector<16x32xf32>
    %132 = arith.mulf %130, %131 : vector<16x32xf32>
    %133 = vector.broadcast %112 : vector<1x32xf32> to vector<16x32xf32>
    %134 = arith.addf %132, %133 : vector<16x32xf32>
    %c0_58 = arith.constant 0 : index
    %c0_59 = arith.constant 0 : index
    %135 = vector.load %arg4[%c0_58, %c0_59] : memref<32x64xf32, #tpu.memory_space<vmem>>, vector<32x64xf32>
    %cst_60 = arith.constant dense<0.000000e+00> : vector<16x64xf32>
    %136 = tpu.matmul %134, %135, %cst_60 {dimension_numbers = #tpu.dot_dimension_numbers<[1], [0], [0], [1], [0, 0, 1, 1], [], []>} : vector<16x32xf32>, vector<32x64xf32>, vector<16x64xf32> -> vector<16x64xf32>
    %c0_61 = arith.constant 0 : index
    %c0_62 = arith.constant 0 : index
    %137 = vector.load %arg5[%c0_61, %c0_62] : memref<1x64xf32, #tpu.memory_space<vmem>>, vector<1x64xf32>
    %138 = vector.broadcast %137 : vector<1x64xf32> to vector<16x64xf32>
    %139 = arith.addf %136, %138 : vector<16x64xf32>
    %c0_63 = arith.constant 0 : index
    %c0_64 = arith.constant 0 : index
    %140 = vector.load %arg6[%c0_63, %c0_64] : memref<64x32xf32, #tpu.memory_space<vmem>>, vector<64x32xf32>
    %cst_65 = arith.constant dense<0.000000e+00> : vector<16x32xf32>
    %141 = tpu.matmul %139, %140, %cst_65 {dimension_numbers = #tpu.dot_dimension_numbers<[1], [0], [0], [1], [0, 0, 1, 1], [], []>} : vector<16x64xf32>, vector<64x32xf32>, vector<16x32xf32> -> vector<16x32xf32>
    %c0_66 = arith.constant 0 : index
    %c0_67 = arith.constant 0 : index
    %142 = vector.load %arg7[%c0_66, %c0_67] : memref<1x32xf32, #tpu.memory_space<vmem>>, vector<1x32xf32>
    %143 = vector.broadcast %142 : vector<1x32xf32> to vector<16x32xf32>
    %144 = arith.addf %141, %143 : vector<16x32xf32>
    %145 = arith.addf %144, %134 : vector<16x32xf32>
    %c0_68 = arith.constant 0 : index
    %c0_69 = arith.constant 0 : index
    %146 = vector.load %arg10[%c0_68, %c0_69] : memref<1x32xf32, #tpu.memory_space<vmem>>, vector<1x32xf32>
    %c0_70 = arith.constant 0 : index
    %c0_71 = arith.constant 0 : index
    %147 = vector.load %arg11[%c0_70, %c0_71] : memref<1x32xf32, #tpu.memory_space<vmem>>, vector<1x32xf32>
    %cst_72 = arith.constant dense<0.000000e+00> : vector<16xf32>
    %148 = vector.multi_reduction <add>, %145, %cst_72 [1] : vector<16x32xf32> to vector<16xf32>
    %149 = vector.shape_cast %148 : vector<16xf32> to vector<16x1xf32>
    %cst_73 = arith.constant 3.200000e+01 : f32
    %150 = vector.broadcast %cst_73 : f32 to vector<16x1xf32>
    %151 = arith.divf %149, %150 : vector<16x1xf32>
    %152 = vector.broadcast %151 : vector<16x1xf32> to vector<16x32xf32>
    %153 = arith.subf %145, %152 : vector<16x32xf32>
    %154 = arith.mulf %153, %153 : vector<16x32xf32>
    %cst_74 = arith.constant dense<0.000000e+00> : vector<16xf32>
    %155 = vector.multi_reduction <add>, %154, %cst_74 [1] : vector<16x32xf32> to vector<16xf32>
    %156 = vector.shape_cast %155 : vector<16xf32> to vector<16x1xf32>
    %cst_75 = arith.constant 3.200000e+01 : f32
    %157 = vector.broadcast %cst_75 : f32 to vector<16x1xf32>
    %158 = arith.divf %156, %157 : vector<16x1xf32>
    %159 = vector.broadcast %151 : vector<16x1xf32> to vector<16x32xf32>
    %160 = arith.subf %145, %159 : vector<16x32xf32>
    %cst_76 = arith.constant 9.99999974E-6 : f32
    %161 = vector.broadcast %cst_76 : f32 to vector<16x1xf32>
    %162 = arith.addf %158, %161 : vector<16x1xf32>
    %163 = math.rsqrt %162 : vector<16x1xf32>
    %164 = vector.broadcast %163 : vector<16x1xf32> to vector<16x32xf32>
    %165 = arith.mulf %160, %164 : vector<16x32xf32>
    %166 = vector.broadcast %146 : vector<1x32xf32> to vector<16x32xf32>
    %167 = arith.mulf %165, %166 : vector<16x32xf32>
    %168 = vector.broadcast %147 : vector<1x32xf32> to vector<16x32xf32>
    %169 = arith.addf %167, %168 : vector<16x32xf32>
    %170 = vector.shape_cast %169 : vector<16x32xf32> to vector<2x8x32xf32>
    %c0_77 = arith.constant 0 : index
    %c0_78 = arith.constant 0 : index
    %c0_79 = arith.constant 0 : index
    %171 = vector.load %arg14[%c0_77, %c0_78, %c0_79] : memref<2x8x32xf32, #tpu.memory_space<vmem>>, vector<2x8x32xf32>
    tpu.vector_store %arg14[%c0_77, %c0_78, %c0_79], %170 {strides = array<i32>} : memref<2x8x32xf32, #tpu.memory_space<vmem>>, vector<2x8x32xf32>,
    return
  }
}

</mosaic_0001>

<llo_original>
// kernel: encoder_layer.1
$region0: #{encoder_layer.1}
  #allocation0 [shape = 'u32[]', space=smem, size = 0x4, offset = 0x4, fixed_abs, tag = 'smem constant byte address 0x4 - core index']
  #allocation1 [shape = 'u32[72,128]{1,0:T(1,128)}', space=vmem, size = 0x9000, scoped, tag = 'internal scratch']
  %s0 = inlined_call_operand.vmem [shape: f32[2,8,32], index: 0, kind: input, shape index: {}]
  %s1 = inlined_call_operand.vmem [shape: f32[8,32], index: 1, kind: input, shape index: {}]
  %s2 = inlined_call_operand.vmem [shape: f32[32,192], index: 2, kind: input, shape index: {}]
  %s3 = inlined_call_operand.vmem [shape: f32[32,32], index: 3, kind: input, shape index: {}]
  %s4 = inlined_call_operand.vmem [shape: f32[32,64], index: 4, kind: input, shape index: {}]
  %s5 = inlined_call_operand.vmem [shape: f32[1,64], index: 5, kind: input, shape index: {}]
  %s6 = inlined_call_operand.vmem [shape: f32[64,32], index: 6, kind: input, shape index: {}]
  %s7 = inlined_call_operand.vmem [shape: f32[1,32], index: 7, kind: input, shape index: {}]
  %s8 = inlined_call_operand.vmem [shape: f32[1,32], index: 8, kind: input, shape index: {}]
  %s9 = inlined_call_operand.vmem [shape: f32[1,32], index: 9, kind: input, shape index: {}]
  %s10 = inlined_call_operand.vmem [shape: f32[1,32], index: 10, kind: input, shape index: {}]
  %s11 = inlined_call_operand.vmem [shape: f32[1,32], index: 11, kind: input, shape index: {}]
  %s12 = inlined_call_operand.vmem [shape: f32[8,32], index: 12, kind: input, shape index: {}]
  %s13 = inlined_call_operand.vmem [shape: f32[4,2,8,8], index: 13, kind: input, shape index: {}]
  %s14 = inlined_call_operand.hbm [shape: f32[2,8,32], index: 14, kind: output, shape index: {}]
  %s15 = sld [smem:[#allocation0]]
  $region66: #{encoder_layer.1} parent=0
    _
  %s17 = ssub.s32 1, %s15
  %s18 = scalar_select 0, %s17, %s15
  $region1: #{encoder_layer.1} parent=0
    #allocation2 [shape = 'u8[8192]{0}', space=vmem, size = 0x2000, scoped, tag = 'output window, operand 0, single buffered']
    #allocation3 [shape = 's32[1]{0}', space=sflag, size = 0x4, scoped, tag = 'scoped memory for encoder_layer.1']
    %19 = vsyncpa [#allocation3], 0
    // Predicated region
    $region2: #{encoder_layer.1} parent=1 // pred_check
      _
    $region3: #{encoder_layer.1} parent=1 // pred_check_branch
      %21 = sbr.rel (0) target = $region5
    $region4: #{encoder_layer.1} parent=1 // pred_region
      _
    $region5: #{encoder_layer.1} parent=1 // pred_fallthru
      _
    // Predicated region
    $region6: #{encoder_layer.1} parent=1 // pred_check
      _
    $region7: #{encoder_layer.1} parent=1 // pred_check_branch
      %23 = sbr.rel (0) target = $region9
    $region8: #{encoder_layer.1} parent=1 // pred_region
      _
    $region9: #{encoder_layer.1} parent=1 // pred_fallthru
      _
    // Predicated region
    $region10: #{encoder_layer.1} parent=1 // pred_check
      _
    $region11: #{encoder_layer.1} parent=1 // pred_check_branch
      %25 = sbr.rel (0) target = $region13
    $region12: #{encoder_layer.1} parent=1 // pred_region
      _
    $region13: #{encoder_layer.1} parent=1 // pred_fallthru
      _
    // Predicated region
    $region14: #{encoder_layer.1} parent=1 // pred_check
      _
    $region15: #{encoder_layer.1} parent=1 // pred_check_branch
      %27 = sbr.rel (0) target = $region17
    $region16: #{encoder_layer.1} parent=1 // pred_region
      _
    $region17: #{encoder_layer.1} parent=1 // pred_fallthru
      _
    // Predicated region
    $region18: #{encoder_layer.1} parent=1 // pred_check
      _
    $region19: #{encoder_layer.1} parent=1 // pred_check_branch
      %29 = sbr.rel (0) target = $region21
    $region20: #{encoder_layer.1} parent=1 // pred_region
      _
    $region21: #{encoder_layer.1} parent=1 // pred_fallthru
      _
    // Predicated region
    $region22: #{encoder_layer.1} parent=1 // pred_check
      _
    $region23: #{encoder_layer.1} parent=1 // pred_check_branch
      %31 = sbr.rel (0) target = $region25
    $region24: #{encoder_layer.1} parent=1 // pred_region
      _
    $region25: #{encoder_layer.1} parent=1 // pred_fallthru
      _
    // Predicated region
    $region26: #{encoder_layer.1} parent=1 // pred_check
      _
    $region27: #{encoder_layer.1} parent=1 // pred_check_branch
      %33 = sbr.rel (0) target = $region29
    $region28: #{encoder_layer.1} parent=1 // pred_region
      _
    $region29: #{encoder_layer.1} parent=1 // pred_fallthru
      _
    // Predicated region
    $region30: #{encoder_layer.1} parent=1 // pred_check
      _
    $region31: #{encoder_layer.1} parent=1 // pred_check_branch
      %35 = sbr.rel (0) target = $region33
    $region32: #{encoder_layer.1} parent=1 // pred_region
      _
    $region33: #{encoder_layer.1} parent=1 // pred_fallthru
      _
    // Predicated region
    $region34: #{encoder_layer.1} parent=1 // pred_check
      _
    $region35: #{encoder_layer.1} parent=1 // pred_check_branch
      %37 = sbr.rel (0) target = $region37
    $region36: #{encoder_layer.1} parent=1 // pred_region
      _
    $region37: #{encoder_layer.1} parent=1 // pred_fallthru
      _
    // Predicated region
    $region38: #{encoder_layer.1} parent=1 // pred_check
      _
    $region39: #{encoder_layer.1} parent=1 // pred_check_branch
      %39 = sbr.rel (0) target = $region41
    $region40: #{encoder_layer.1} parent=1 // pred_region
      _
    $region41: #{encoder_layer.1} parent=1 // pred_fallthru
      _
    // Predicated region
    $region42: #{encoder_layer.1} parent=1 // pred_check
      _
    $region43: #{encoder_layer.1} parent=1 // pred_check_branch
      %41 = sbr.rel (0) target = $region45
    $region44: #{encoder_layer.1} parent=1 // pred_region
      _
    $region45: #{encoder_layer.1} parent=1 // pred_fallthru
      _
    // Predicated region
    $region46: #{encoder_layer.1} parent=1 // pred_check
      _
    $region47: #{encoder_layer.1} parent=1 // pred_check_branch
      %43 = sbr.rel (0) target = $region49
    $region48: #{encoder_layer.1} parent=1 // pred_region
      _
    $region49: #{encoder_layer.1} parent=1 // pred_fallthru
      _
    // Predicated region
    $region50: #{encoder_layer.1} parent=1 // pred_check
      _
    $region51: #{encoder_layer.1} parent=1 // pred_check_branch
      %45 = sbr.rel (0) target = $region53
    $region52: #{encoder_layer.1} parent=1 // pred_region
      _
    $region53: #{encoder_layer.1} parent=1 // pred_fallthru
      _
    // Predicated region
    $region54: #{encoder_layer.1} parent=1 // pred_check
      _
    $region55: #{encoder_layer.1} parent=1 // pred_check_branch
      %47 = sbr.rel (0) target = $region57
    $region56: #{encoder_layer.1} parent=1 // pred_region
      _
    $region57: #{encoder_layer.1} parent=1 // pred_fallthru
      _
    %v48 = vld [vmem:[%s0] sm:$0xff]
    %v49 = vld [vmem:[%s0 + $0x8] sm:$0xff]
    %v50 = vld [vmem:[%s1] sm:$0xff]
    %v51 = vadd.f32 %v48, %v50
    %v52 = vadd.f32 %v49, %v50
    %v53 = vld [vmem:[%s2] sm:$0xff]
    %v54 = vld [vmem:[%s2 + $0x8] sm:$0xff]
    %v55 = vld [vmem:[%s2 + $0x10] sm:$0xff]
    %v56 = vld [vmem:[%s2 + $0x18] sm:$0xff]
    %v57 = vld [vmem:[%s2 + $0x20] sm:$0xff]
    %v58 = vld [vmem:[%s2 + $0x28] sm:$0xff]
    %v59 = vld [vmem:[%s2 + $0x30] sm:$0xff]
    %v60 = vld [vmem:[%s2 + $0x38] sm:$0xff]
    %vm61 = vcmask 261120
    %v63 = vsel %vm61, %v51, 0
    %v66 = vsel %vm61, %v52, 0
    %68 = vmatpush.msra.mxu0 0.0
    %69 = vmatpush.msra.mxu0 0.0
    %70 = vmatpush.msra.mxu0 0.0
    %71 = vmatpush.msra.mxu0 0.0
    %72 = vmatpush.msra.mxu0 0.0
    %73 = vmatpush.msra.mxu0 0.0
    %74 = vmatpush.msra.mxu0 0.0
    %75 = vmatpush.msra.mxu0 0.0
    %76 = vmatpush.msra.mxu0 0.0
    %77 = vmatpush.msra.mxu0 0.0
    %78 = vmatpush.msra.mxu0 0.0
    %79 = vmatpush.msra.mxu0 0.0
    %80 = vmatpush.msra.mxu0 %v59
    %81 = vmatpush.msra.mxu0 %v57
    %82 = vmatpush.msra.mxu0 %v55
    %83 = vmatpush.msra.mxu0 %v53
    %84 = vmatmul.f32.gmra.mxu0 %v63
    %v85 = vpop.f32.mrf.mxu0
    %v86 = vadd.f32 0.0, %v85
    %87 = vmatmul.f32.gmra.mxu0 %v66
    %v88 = vpop.f32.mrf.mxu0
    %v89 = vadd.f32 0.0, %v88
    %90 = vdwg.mxu0
    %91 = vmatpush.msra.mxu0 0.0
    %92 = vmatpush.msra.mxu0 0.0
    %93 = vmatpush.msra.mxu0 0.0
    %94 = vmatpush.msra.mxu0 0.0
    %95 = vmatpush.msra.mxu0 0.0
    %96 = vmatpush.msra.mxu0 0.0
    %97 = vmatpush.msra.mxu0 0.0
    %98 = vmatpush.msra.mxu0 0.0
    %99 = vmatpush.msra.mxu0 0.0
    %100 = vmatpush.msra.mxu0 0.0
    %101 = vmatpush.msra.mxu0 0.0
    %102 = vmatpush.msra.mxu0 0.0
    %103 = vmatpush.msra.mxu0 %v60
    %104 = vmatpush.msra.mxu0 %v58
    %105 = vmatpush.msra.mxu0 %v56
    %106 = vmatpush.msra.mxu0 %v54
    %107 = vmatmul.f32.gmra.mxu0 %v63
    %v108 = vpop.f32.mrf.mxu0
    %v109 = vadd.f32 0.0, %v108
    %110 = vmatmul.f32.gmra.mxu0 %v66
    %v111 = vpop.f32.mrf.mxu0
    %v112 = vadd.f32 0.0, %v111
    %113 = vdwg.mxu0
    %v114 = vld [vmem:[%s12] sm:$0xff]
    %v115 = vmul.f32 %v86, 0.35355338
    %v116 = vmul.f32 %v89, 0.35355338
    %118 = vrot.lane.b32.xlu0 %v115, 96
    %v119 = vpop.permute.xlu0 %118
    %vm120 = vcmask 64512
    %v121 = vsel %vm120, %v119, 0
    %v124 = vsel %vm120, %v86, 0
    %126 = vmatpush.xpose.msra.mxu0 0.0
    %127 = vmatpush.xpose.msra.mxu0 0.0
    %128 = vmatpush.xpose.msra.mxu0 0.0
    %129 = vmatpush.xpose.msra.mxu0 0.0
    %130 = vmatpush.xpose.msra.mxu0 0.0
    %131 = vmatpush.xpose.msra.mxu0 0.0
    %132 = vmatpush.xpose.msra.mxu0 0.0
    %133 = vmatpush.xpose.msra.mxu0 0.0
    %134 = vmatpush.xpose.msra.mxu0 0.0
    %135 = vmatpush.xpose.msra.mxu0 0.0
    %136 = vmatpush.xpose.msra.mxu0 0.0
    %137 = vmatpush.xpose.msra.mxu0 0.0
    %138 = vmatpush.xpose.msra.mxu0 0.0
    %139 = vmatpush.xpose.msra.mxu0 0.0
    %140 = vmatpush.xpose.msra.mxu0 0.0
    %141 = vmatpush.xpose.msra.mxu0 %v124
    %142 = vmatmul.f32.gmra.mxu0 %v121
    %v143 = vpop.f32.mrf.mxu0
    %v144 = vadd.f32 0.0, %v143
    %145 = vdwg.mxu0
    %147 = vrot.lane.b32.xlu0 %v116, 96
    %v148 = vpop.permute.xlu0 %147
    %v149 = vsel %vm120, %v148, 0
    %v152 = vsel %vm120, %v89, 0
    %154 = vmatpush.xpose.msra.mxu0 0.0
    %155 = vmatpush.xpose.msra.mxu0 0.0
    %156 = vmatpush.xpose.msra.mxu0 0.0
    %157 = vmatpush.xpose.msra.mxu0 0.0
    %158 = vmatpush.xpose.msra.mxu0 0.0
    %159 = vmatpush.xpose.msra.mxu0 0.0
    %160 = vmatpush.xpose.msra.mxu0 0.0
    %161 = vmatpush.xpose.msra.mxu0 0.0
    %162 = vmatpush.xpose.msra.mxu0 0.0
    %163 = vmatpush.xpose.msra.mxu0 0.0
    %164 = vmatpush.xpose.msra.mxu0 0.0
    %165 = vmatpush.xpose.msra.mxu0 0.0
    %166 = vmatpush.xpose.msra.mxu0 0.0
    %167 = vmatpush.xpose.msra.mxu0 0.0
    %168 = vmatpush.xpose.msra.mxu0 0.0
    %169 = vmatpush.xpose.msra.mxu0 %v152
    %170 = vmatmul.f32.gmra.mxu0 %v149
    %v171 = vpop.f32.mrf.mxu0
    %v172 = vadd.f32 0.0, %v171
    %173 = vdwg.mxu0
    %v174 = vsel %vm120, %v144, -inf
    %175 = vmax.xlane.f32.xlu0 %v174
    %v176 = vpop.xlane.xlu0 %175
    %v177 = vsel %vm120, %v172, -inf
    %178 = vmax.xlane.f32.xlu0 %v177
    %v179 = vpop.xlane.xlu0 %178
    %v180 = vsub.f32 %v144, %v176
    %v181 = vsub.f32 %v172, %v179
    %v182 = vmul.f32 %v180, 1.442695
    %v183 = vpow.pop %v182
    %v184 = vmul.f32 %v181, 1.442695
    %v185 = vpow.pop %v184
    %v186 = vsel %vm120, %v183, 0.0
    %187 = vadd.xlane.f32.xlu0 %v186
    %v188 = vpop.xlane.xlu0 %187
    %v189 = vsel %vm120, %v185, 0.0
    %190 = vadd.xlane.f32.xlu0 %v189
    %v191 = vpop.xlane.xlu0 %190
    %v192 = vrcp.pop %v188
    %v193 = vrcp.pop %v191
    %v194 = vmul.f32 %v183, %v192
    %v195 = vmul.f32 %v185, %v193
    %196 = vrot.lane.b32.xlu0 %v86, 64
    %v197 = vpop.permute.xlu0 %196
    %v200 = vsel %vm120, %v194, 0
    %202 = vmatpush.msra.mxu0 0.0
    %203 = vmatpush.msra.mxu0 0.0
    %204 = vmatpush.msra.mxu0 0.0
    %205 = vmatpush.msra.mxu0 0.0
    %206 = vmatpush.msra.mxu0 0.0
    %207 = vmatpush.msra.mxu0 0.0
    %208 = vmatpush.msra.mxu0 0.0
    %209 = vmatpush.msra.mxu0 0.0
    %210 = vmatpush.msra.mxu0 0.0
    %211 = vmatpush.msra.mxu0 0.0
    %212 = vmatpush.msra.mxu0 0.0
    %213 = vmatpush.msra.mxu0 0.0
    %214 = vmatpush.msra.mxu0 0.0
    %215 = vmatpush.msra.mxu0 0.0
    %216 = vmatpush.msra.mxu0 0.0
    %217 = vmatpush.msra.mxu0 %v197
    %218 = vmatmul.f32.gmra.mxu0 %v200
    %v219 = vpop.f32.mrf.mxu0
    %v220 = vadd.f32 0.0, %v219
    %221 = vdwg.mxu0
    %222 = vrot.lane.b32.xlu0 %v89, 64
    %v223 = vpop.permute.xlu0 %222
    %v226 = vsel %vm120, %v195, 0
    %228 = vmatpush.msra.mxu0 0.0
    %229 = vmatpush.msra.mxu0 0.0
    %230 = vmatpush.msra.mxu0 0.0
    %231 = vmatpush.msra.mxu0 0.0
    %232 = vmatpush.msra.mxu0 0.0
    %233 = vmatpush.msra.mxu0 0.0
    %234 = vmatpush.msra.mxu0 0.0
    %235 = vmatpush.msra.mxu0 0.0
    %236 = vmatpush.msra.mxu0 0.0
    %237 = vmatpush.msra.mxu0 0.0
    %238 = vmatpush.msra.mxu0 0.0
    %239 = vmatpush.msra.mxu0 0.0
    %240 = vmatpush.msra.mxu0 0.0
    %241 = vmatpush.msra.mxu0 0.0
    %242 = vmatpush.msra.mxu0 0.0
    %243 = vmatpush.msra.mxu0 %v223
    %244 = vmatmul.f32.gmra.mxu0 %v226
    %v245 = vpop.f32.mrf.mxu0
    %v246 = vadd.f32 0.0, %v245
    %247 = vdwg.mxu0
    %v248 = vld [vmem:[%s13] sm:$0xff]
    %v249 = vld [vmem:[%s13 + $0x8] sm:$0xff]
    %v250 = vmul.f32 %v220, %v114
    %v251 = vmul.f32 %v246, %v114
    %252 = vrot.lane.b32.xlu0 %v115, 88
    %v253 = vpop.permute.xlu0 %252
    %254 = vrot.lane.b32.xlu0 %v86, 120
    %v255 = vpop.permute.xlu0 %254
    %v256 = vsel %vm120, %v253, 0
    %v258 = vsel %vm120, %v255, 0
    %260 = vmatpush.xpose.msra.mxu0 0.0
    %261 = vmatpush.xpose.msra.mxu0 0.0
    %262 = vmatpush.xpose.msra.mxu0 0.0
    %263 = vmatpush.xpose.msra.mxu0 0.0
    %264 = vmatpush.xpose.msra.mxu0 0.0
    %265 = vmatpush.xpose.msra.mxu0 0.0
    %266 = vmatpush.xpose.msra.mxu0 0.0
    %267 = vmatpush.xpose.msra.mxu0 0.0
    %268 = vmatpush.xpose.msra.mxu0 0.0
    %269 = vmatpush.xpose.msra.mxu0 0.0
    %270 = vmatpush.xpose.msra.mxu0 0.0
    %271 = vmatpush.xpose.msra.mxu0 0.0
    %272 = vmatpush.xpose.msra.mxu0 0.0
    %273 = vmatpush.xpose.msra.mxu0 0.0
    %274 = vmatpush.xpose.msra.mxu0 0.0
    %275 = vmatpush.xpose.msra.mxu0 %v258
    %276 = vmatmul.f32.gmra.mxu0 %v256
    %v277 = vpop.f32.mrf.mxu0
    %v278 = vadd.f32 0.0, %v277
    %279 = vdwg.mxu0
    %280 = vrot.lane.b32.xlu0 %v116, 88
    %v281 = vpop.permute.xlu0 %280
    %282 = vrot.lane.b32.xlu0 %v89, 120
    %v283 = vpop.permute.xlu0 %282
    %v284 = vsel %vm120, %v281, 0
    %v286 = vsel %vm120, %v283, 0
    %288 = vmatpush.xpose.msra.mxu0 0.0
    %289 = vmatpush.xpose.msra.mxu0 0.0
    %290 = vmatpush.xpose.msra.mxu0 0.0
    %291 = vmatpush.xpose.msra.mxu0 0.0
    %292 = vmatpush.xpose.msra.mxu0 0.0
    %293 = vmatpush.xpose.msra.mxu0 0.0
    %294 = vmatpush.xpose.msra.mxu0 0.0
    %295 = vmatpush.xpose.msra.mxu0 0.0
    %296 = vmatpush.xpose.msra.mxu0 0.0
    %297 = vmatpush.xpose.msra.mxu0 0.0
    %298 = vmatpush.xpose.msra.mxu0 0.0
    %299 = vmatpush.xpose.msra.mxu0 0.0
    %300 = vmatpush.xpose.msra.mxu0 0.0
    %301 = vmatpush.xpose.msra.mxu0 0.0
    %302 = vmatpush.xpose.msra.mxu0 0.0
    %303 = vmatpush.xpose.msra.mxu0 %v286
    %304 = vmatmul.f32.gmra.mxu0 %v284
    %v305 = vpop.f32.mrf.mxu0
    %v306 = vadd.f32 0.0, %v305
    %307 = vdwg.mxu0
    %v308 = vsel %vm120, %v278, -inf
    %309 = vmax.xlane.f32.xlu0 %v308
    %v310 = vpop.xlane.xlu0 %309
    %v311 = vsel %vm120, %v306, -inf
    %312 = vmax.xlane.f32.xlu0 %v311
    %v313 = vpop.xlane.xlu0 %312
    %v314 = vsub.f32 %v278, %v310
    %v315 = vsub.f32 %v306, %v313
    %v316 = vmul.f32 %v314, 1.442695
    %v317 = vpow.pop %v316
    %v318 = vmul.f32 %v315, 1.442695
    %v319 = vpow.pop %v318
    %v320 = vsel %vm120, %v317, 0.0
    %321 = vadd.xlane.f32.xlu0 %v320
    %v322 = vpop.xlane.xlu0 %321
    %v323 = vsel %vm120, %v319, 0.0
    %324 = vadd.xlane.f32.xlu0 %v323
    %v325 = vpop.xlane.xlu0 %324
    %v326 = vrcp.pop %v322
    %v327 = vrcp.pop %v325
    %v328 = vmul.f32 %v317, %v326
    %v329 = vmul.f32 %v319, %v327
    %330 = vrot.lane.b32.xlu0 %v86, 32
    %v331 = vpop.permute.xlu0 %330
    %v334 = vsel %vm120, %v328, 0
    %336 = vmatpush.msra.mxu0 0.0
    %337 = vmatpush.msra.mxu0 0.0
    %338 = vmatpush.msra.mxu0 0.0
    %339 = vmatpush.msra.mxu0 0.0
    %340 = vmatpush.msra.mxu0 0.0
    %341 = vmatpush.msra.mxu0 0.0
    %342 = vmatpush.msra.mxu0 0.0
    %343 = vmatpush.msra.mxu0 0.0
    %344 = vmatpush.msra.mxu0 0.0
    %345 = vmatpush.msra.mxu0 0.0
    %346 = vmatpush.msra.mxu0 0.0
    %347 = vmatpush.msra.mxu0 0.0
    %348 = vmatpush.msra.mxu0 0.0
    %349 = vmatpush.msra.mxu0 0.0
    %350 = vmatpush.msra.mxu0 0.0
    %351 = vmatpush.msra.mxu0 %v331
    %352 = vmatmul.f32.gmra.mxu0 %v334
    %v353 = vpop.f32.mrf.mxu0
    %v354 = vadd.f32 0.0, %v353
    %355 = vdwg.mxu0
    %356 = vrot.lane.b32.xlu0 %v89, 32
    %v357 = vpop.permute.xlu0 %356
    %v360 = vsel %vm120, %v329, 0
    %362 = vmatpush.msra.mxu0 0.0
    %363 = vmatpush.msra.mxu0 0.0
    %364 = vmatpush.msra.mxu0 0.0
    %365 = vmatpush.msra.mxu0 0.0
    %366 = vmatpush.msra.mxu0 0.0
    %367 = vmatpush.msra.mxu0 0.0
    %368 = vmatpush.msra.mxu0 0.0
    %369 = vmatpush.msra.mxu0 0.0
    %370 = vmatpush.msra.mxu0 0.0
    %371 = vmatpush.msra.mxu0 0.0
    %372 = vmatpush.msra.mxu0 0.0
    %373 = vmatpush.msra.mxu0 0.0
    %374 = vmatpush.msra.mxu0 0.0
    %375 = vmatpush.msra.mxu0 0.0
    %376 = vmatpush.msra.mxu0 0.0
    %377 = vmatpush.msra.mxu0 %v357
    %378 = vmatmul.f32.gmra.mxu0 %v360
    %v379 = vpop.f32.mrf.mxu0
    %v380 = vadd.f32 0.0, %v379
    %381 = vdwg.mxu0
    %s382 = scalar_lea.vmem %s13, 16
    %v383 = vld [vmem:[%s382] sm:$0xff]
    %v384 = vld [vmem:[%s382 + $0x8] sm:$0xff]
    %v385 = vmul.f32 %v354, %v114
    %v386 = vmul.f32 %v380, %v114
    %v388 = vsel %vm120, %v383, 0
    %390 = vmatpush.msra.mxu0 0.0
    %391 = vmatpush.msra.mxu0 0.0
    %392 = vmatpush.msra.mxu0 0.0
    %393 = vmatpush.msra.mxu0 0.0
    %394 = vmatpush.msra.mxu0 0.0
    %395 = vmatpush.msra.mxu0 0.0
    %396 = vmatpush.msra.mxu0 0.0
    %397 = vmatpush.msra.mxu0 0.0
    %398 = vmatpush.msra.mxu0 0.0
    %399 = vmatpush.msra.mxu0 0.0
    %400 = vmatpush.msra.mxu0 0.0
    %401 = vmatpush.msra.mxu0 0.0
    %402 = vmatpush.msra.mxu0 0.0
    %403 = vmatpush.msra.mxu0 0.0
    %404 = vmatpush.msra.mxu0 0.0
    %405 = vmatpush.msra.mxu0 %v385
    %406 = vmatmul.f32.gmra.mxu0 %v388
    %v407 = vpop.f32.mrf.mxu0
    %v408 = vadd.f32 0.0, %v407
    %409 = vdwg.mxu0
    %v411 = vsel %vm120, %v384, 0
    %413 = vmatpush.msra.mxu0 0.0
    %414 = vmatpush.msra.mxu0 0.0
    %415 = vmatpush.msra.mxu0 0.0
    %416 = vmatpush.msra.mxu0 0.0
    %417 = vmatpush.msra.mxu0 0.0
    %418 = vmatpush.msra.mxu0 0.0
    %419 = vmatpush.msra.mxu0 0.0
    %420 = vmatpush.msra.mxu0 0.0
    %421 = vmatpush.msra.mxu0 0.0
    %422 = vmatpush.msra.mxu0 0.0
    %423 = vmatpush.msra.mxu0 0.0
    %424 = vmatpush.msra.mxu0 0.0
    %425 = vmatpush.msra.mxu0 0.0
    %426 = vmatpush.msra.mxu0 0.0
    %427 = vmatpush.msra.mxu0 0.0
    %428 = vmatpush.msra.mxu0 %v386
    %429 = vmatmul.f32.gmra.mxu0 %v411
    %v430 = vpop.f32.mrf.mxu0
    %v431 = vadd.f32 0.0, %v430
    %432 = vdwg.mxu0
    %v434 = vsel %vm120, %v248, 0
    %436 = vmatpush.msra.mxu0 0.0
    %437 = vmatpush.msra.mxu0 0.0
    %438 = vmatpush.msra.mxu0 0.0
    %439 = vmatpush.msra.mxu0 0.0
    %440 = vmatpush.msra.mxu0 0.0
    %441 = vmatpush.msra.mxu0 0.0
    %442 = vmatpush.msra.mxu0 0.0
    %443 = vmatpush.msra.mxu0 0.0
    %444 = vmatpush.msra.mxu0 0.0
    %445 = vmatpush.msra.mxu0 0.0
    %446 = vmatpush.msra.mxu0 0.0
    %447 = vmatpush.msra.mxu0 0.0
    %448 = vmatpush.msra.mxu0 0.0
    %449 = vmatpush.msra.mxu0 0.0
    %450 = vmatpush.msra.mxu0 0.0
    %451 = vmatpush.msra.mxu0 %v250
    %452 = vmatmul.f32.gmra.mxu0 %v434
    %v453 = vpop.f32.mrf.mxu0
    %v454 = vadd.f32 %v408, %v453
    %455 = vdwg.mxu0
    %v457 = vsel %vm120, %v249, 0
    %459 = vmatpush.msra.mxu0 0.0
    %460 = vmatpush.msra.mxu0 0.0
    %461 = vmatpush.msra.mxu0 0.0
    %462 = vmatpush.msra.mxu0 0.0
    %463 = vmatpush.msra.mxu0 0.0
    %464 = vmatpush.msra.mxu0 0.0
    %465 = vmatpush.msra.mxu0 0.0
    %466 = vmatpush.msra.mxu0 0.0
    %467 = vmatpush.msra.mxu0 0.0
    %468 = vmatpush.msra.mxu0 0.0
    %469 = vmatpush.msra.mxu0 0.0
    %470 = vmatpush.msra.mxu0 0.0
    %471 = vmatpush.msra.mxu0 0.0
    %472 = vmatpush.msra.mxu0 0.0
    %473 = vmatpush.msra.mxu0 0.0
    %474 = vmatpush.msra.mxu0 %v251
    %475 = vmatmul.f32.gmra.mxu0 %v457
    %v476 = vpop.f32.mrf.mxu0
    %v477 = vadd.f32 %v431, %v476
    %478 = vdwg.mxu0
    %479 = vrot.lane.b32.xlu0 %v115, 80
    %v480 = vpop.permute.xlu0 %479
    %481 = vrot.lane.b32.xlu0 %v86, 112
    %v482 = vpop.permute.xlu0 %481
    %v483 = vsel %vm120, %v480, 0
    %v485 = vsel %vm120, %v482, 0
    %487 = vmatpush.xpose.msra.mxu0 0.0
    %488 = vmatpush.xpose.msra.mxu0 0.0
    %489 = vmatpush.xpose.msra.mxu0 0.0
    %490 = vmatpush.xpose.msra.mxu0 0.0
    %491 = vmatpush.xpose.msra.mxu0 0.0
    %492 = vmatpush.xpose.msra.mxu0 0.0
    %493 = vmatpush.xpose.msra.mxu0 0.0
    %494 = vmatpush.xpose.msra.mxu0 0.0
    %495 = vmatpush.xpose.msra.mxu0 0.0
    %496 = vmatpush.xpose.msra.mxu0 0.0
    %497 = vmatpush.xpose.msra.mxu0 0.0
    %498 = vmatpush.xpose.msra.mxu0 0.0
    %499 = vmatpush.xpose.msra.mxu0 0.0
    %500 = vmatpush.xpose.msra.mxu0 0.0
    %501 = vmatpush.xpose.msra.mxu0 0.0
    %502 = vmatpush.xpose.msra.mxu0 %v485
    %503 = vmatmul.f32.gmra.mxu0 %v483
    %v504 = vpop.f32.mrf.mxu0
    %v505 = vadd.f32 0.0, %v504
    %506 = vdwg.mxu0
    %507 = vrot.lane.b32.xlu0 %v116, 80
    %v508 = vpop.permute.xlu0 %507
    %509 = vrot.lane.b32.xlu0 %v89, 112
    %v510 = vpop.permute.xlu0 %509
    %v511 = vsel %vm120, %v508, 0
    %v513 = vsel %vm120, %v510, 0
    %515 = vmatpush.xpose.msra.mxu0 0.0
    %516 = vmatpush.xpose.msra.mxu0 0.0
    %517 = vmatpush.xpose.msra.mxu0 0.0
    %518 = vmatpush.xpose.msra.mxu0 0.0
    %519 = vmatpush.xpose.msra.mxu0 0.0
    %520 = vmatpush.xpose.msra.mxu0 0.0
    %521 = vmatpush.xpose.msra.mxu0 0.0
    %522 = vmatpush.xpose.msra.mxu0 0.0
    %523 = vmatpush.xpose.msra.mxu0 0.0
    %524 = vmatpush.xpose.msra.mxu0 0.0
    %525 = vmatpush.xpose.msra.mxu0 0.0
    %526 = vmatpush.xpose.msra.mxu0 0.0
    %527 = vmatpush.xpose.msra.mxu0 0.0
    %528 = vmatpush.xpose.msra.mxu0 0.0
    %529 = vmatpush.xpose.msra.mxu0 0.0
    %530 = vmatpush.xpose.msra.mxu0 %v513
    %531 = vmatmul.f32.gmra.mxu0 %v511
    %v532 = vpop.f32.mrf.mxu0
    %v533 = vadd.f32 0.0, %v532
    %534 = vdwg.mxu0
    %v535 = vsel %vm120, %v505, -inf
    %536 = vmax.xlane.f32.xlu0 %v535
    %v537 = vpop.xlane.xlu0 %536
    %v538 = vsel %vm120, %v533, -inf
    %539 = vmax.xlane.f32.xlu0 %v538
    %v540 = vpop.xlane.xlu0 %539
    %v541 = vsub.f32 %v505, %v537
    %v542 = vsub.f32 %v533, %v540
    %v543 = vmul.f32 %v541, 1.442695
    %v544 = vpow.pop %v543
    %v545 = vmul.f32 %v542, 1.442695
    %v546 = vpow.pop %v545
    %v547 = vsel %vm120, %v544, 0.0
    %548 = vadd.xlane.f32.xlu0 %v547
    %v549 = vpop.xlane.xlu0 %548
    %v550 = vsel %vm120, %v546, 0.0
    %551 = vadd.xlane.f32.xlu0 %v550
    %v552 = vpop.xlane.xlu0 %551
    %v553 = vrcp.pop %v549
    %v554 = vrcp.pop %v552
    %v555 = vmul.f32 %v544, %v553
    %v556 = vmul.f32 %v546, %v554
    %v558 = vsel %vm120, %v555, 0
    %560 = vmatpush.msra.mxu0 0.0
    %561 = vmatpush.msra.mxu0 0.0
    %562 = vmatpush.msra.mxu0 0.0
    %563 = vmatpush.msra.mxu0 0.0
    %564 = vmatpush.msra.mxu0 0.0
    %565 = vmatpush.msra.mxu0 0.0
    %566 = vmatpush.msra.mxu0 0.0
    %567 = vmatpush.msra.mxu0 0.0
    %568 = vmatpush.msra.mxu0 0.0
    %569 = vmatpush.msra.mxu0 0.0
    %570 = vmatpush.msra.mxu0 0.0
    %571 = vmatpush.msra.mxu0 0.0
    %572 = vmatpush.msra.mxu0 0.0
    %573 = vmatpush.msra.mxu0 0.0
    %574 = vmatpush.msra.mxu0 0.0
    %575 = vmatpush.msra.mxu0 %v109
    %576 = vmatmul.f32.gmra.mxu0 %v558
    %v577 = vpop.f32.mrf.mxu0
    %v578 = vadd.f32 0.0, %v577
    %579 = vdwg.mxu0
    %v581 = vsel %vm120, %v556, 0
    %583 = vmatpush.msra.mxu0 0.0
    %584 = vmatpush.msra.mxu0 0.0
    %585 = vmatpush.msra.mxu0 0.0
    %586 = vmatpush.msra.mxu0 0.0
    %587 = vmatpush.msra.mxu0 0.0
    %588 = vmatpush.msra.mxu0 0.0
    %589 = vmatpush.msra.mxu0 0.0
    %590 = vmatpush.msra.mxu0 0.0
    %591 = vmatpush.msra.mxu0 0.0
    %592 = vmatpush.msra.mxu0 0.0
    %593 = vmatpush.msra.mxu0 0.0
    %594 = vmatpush.msra.mxu0 0.0
    %595 = vmatpush.msra.mxu0 0.0
    %596 = vmatpush.msra.mxu0 0.0
    %597 = vmatpush.msra.mxu0 0.0
    %598 = vmatpush.msra.mxu0 %v112
    %599 = vmatmul.f32.gmra.mxu0 %v581
    %v600 = vpop.f32.mrf.mxu0
    %v601 = vadd.f32 0.0, %v600
    %602 = vdwg.mxu0
    %s603 = scalar_lea.vmem %s13, 32
    %v604 = vld [vmem:[%s603] sm:$0xff]
    %v605 = vld [vmem:[%s603 + $0x8] sm:$0xff]
    %v606 = vmul.f32 %v578, %v114
    %v607 = vmul.f32 %v601, %v114
    %v609 = vsel %vm120, %v604, 0
    %611 = vmatpush.msra.mxu0 0.0
    %612 = vmatpush.msra.mxu0 0.0
    %613 = vmatpush.msra.mxu0 0.0
    %614 = vmatpush.msra.mxu0 0.0
    %615 = vmatpush.msra.mxu0 0.0
    %616 = vmatpush.msra.mxu0 0.0
    %617 = vmatpush.msra.mxu0 0.0
    %618 = vmatpush.msra.mxu0 0.0
    %619 = vmatpush.msra.mxu0 0.0
    %620 = vmatpush.msra.mxu0 0.0
    %621 = vmatpush.msra.mxu0 0.0
    %622 = vmatpush.msra.mxu0 0.0
    %623 = vmatpush.msra.mxu0 0.0
    %624 = vmatpush.msra.mxu0 0.0
    %625 = vmatpush.msra.mxu0 0.0
    %626 = vmatpush.msra.mxu0 %v606
    %627 = vmatmul.f32.gmra.mxu0 %v609
    %v628 = vpop.f32.mrf.mxu0
    %v629 = vadd.f32 0.0, %v628
    %630 = vdwg.mxu0
    %v632 = vsel %vm120, %v605, 0
    %634 = vmatpush.msra.mxu0 0.0
    %635 = vmatpush.msra.mxu0 0.0
    %636 = vmatpush.msra.mxu0 0.0
    %637 = vmatpush.msra.mxu0 0.0
    %638 = vmatpush.msra.mxu0 0.0
    %639 = vmatpush.msra.mxu0 0.0
    %640 = vmatpush.msra.mxu0 0.0
    %641 = vmatpush.msra.mxu0 0.0
    %642 = vmatpush.msra.mxu0 0.0
    %643 = vmatpush.msra.mxu0 0.0
    %644 = vmatpush.msra.mxu0 0.0
    %645 = vmatpush.msra.mxu0 0.0
    %646 = vmatpush.msra.mxu0 0.0
    %647 = vmatpush.msra.mxu0 0.0
    %648 = vmatpush.msra.mxu0 0.0
    %649 = vmatpush.msra.mxu0 %v607
    %650 = vmatmul.f32.gmra.mxu0 %v632
    %v651 = vpop.f32.mrf.mxu0
    %v652 = vadd.f32 0.0, %v651
    %653 = vdwg.mxu0
    %v654 = vadd.f32 %v454, %v629
    %v655 = vadd.f32 %v477, %v652
    %656 = vrot.lane.b32.xlu0 %v115, 72
    %v657 = vpop.permute.xlu0 %656
    %658 = vrot.lane.b32.xlu0 %v86, 104
    %v659 = vpop.permute.xlu0 %658
    %v660 = vsel %vm120, %v657, 0
    %v662 = vsel %vm120, %v659, 0
    %664 = vmatpush.xpose.msra.mxu0 0.0
    %665 = vmatpush.xpose.msra.mxu0 0.0
    %666 = vmatpush.xpose.msra.mxu0 0.0
    %667 = vmatpush.xpose.msra.mxu0 0.0
    %668 = vmatpush.xpose.msra.mxu0 0.0
    %669 = vmatpush.xpose.msra.mxu0 0.0
    %670 = vmatpush.xpose.msra.mxu0 0.0
    %671 = vmatpush.xpose.msra.mxu0 0.0
    %672 = vmatpush.xpose.msra.mxu0 0.0
    %673 = vmatpush.xpose.msra.mxu0 0.0
    %674 = vmatpush.xpose.msra.mxu0 0.0
    %675 = vmatpush.xpose.msra.mxu0 0.0
    %676 = vmatpush.xpose.msra.mxu0 0.0
    %677 = vmatpush.xpose.msra.mxu0 0.0
    %678 = vmatpush.xpose.msra.mxu0 0.0
    %679 = vmatpush.xpose.msra.mxu0 %v662
    %680 = vmatmul.f32.gmra.mxu0 %v660
    %v681 = vpop.f32.mrf.mxu0
    %v682 = vadd.f32 0.0, %v681
    %683 = vdwg.mxu0
    %684 = vrot.lane.b32.xlu0 %v116, 72
    %v685 = vpop.permute.xlu0 %684
    %686 = vrot.lane.b32.xlu0 %v89, 104
    %v687 = vpop.permute.xlu0 %686
    %v688 = vsel %vm120, %v685, 0
    %v690 = vsel %vm120, %v687, 0
    %692 = vmatpush.xpose.msra.mxu0 0.0
    %693 = vmatpush.xpose.msra.mxu0 0.0
    %694 = vmatpush.xpose.msra.mxu0 0.0
    %695 = vmatpush.xpose.msra.mxu0 0.0
    %696 = vmatpush.xpose.msra.mxu0 0.0
    %697 = vmatpush.xpose.msra.mxu0 0.0
    %698 = vmatpush.xpose.msra.mxu0 0.0
    %699 = vmatpush.xpose.msra.mxu0 0.0
    %700 = vmatpush.xpose.msra.mxu0 0.0
    %701 = vmatpush.xpose.msra.mxu0 0.0
    %702 = vmatpush.xpose.msra.mxu0 0.0
    %703 = vmatpush.xpose.msra.mxu0 0.0
    %704 = vmatpush.xpose.msra.mxu0 0.0
    %705 = vmatpush.xpose.msra.mxu0 0.0
    %706 = vmatpush.xpose.msra.mxu0 0.0
    %707 = vmatpush.xpose.msra.mxu0 %v690
    %708 = vmatmul.f32.gmra.mxu0 %v688
    %v709 = vpop.f32.mrf.mxu0
    %v710 = vadd.f32 0.0, %v709
    %711 = vdwg.mxu0
    %v712 = vsel %vm120, %v682, -inf
    %713 = vmax.xlane.f32.xlu0 %v712
    %v714 = vpop.xlane.xlu0 %713
    %v715 = vsel %vm120, %v710, -inf
    %716 = vmax.xlane.f32.xlu0 %v715
    %v717 = vpop.xlane.xlu0 %716
    %v718 = vsub.f32 %v682, %v714
    %v719 = vsub.f32 %v710, %v717
    %v720 = vmul.f32 %v718, 1.442695
    %v721 = vpow.pop %v720
    %v722 = vmul.f32 %v719, 1.442695
    %v723 = vpow.pop %v722
    %v724 = vsel %vm120, %v721, 0.0
    %725 = vadd.xlane.f32.xlu0 %v724
    %v726 = vpop.xlane.xlu0 %725
    %v727 = vsel %vm120, %v723, 0.0
    %728 = vadd.xlane.f32.xlu0 %v727
    %v729 = vpop.xlane.xlu0 %728
    %v730 = vrcp.pop %v726
    %v731 = vrcp.pop %v729
    %v732 = vmul.f32 %v721, %v730
    %v733 = vmul.f32 %v723, %v731
    %735 = vrot.lane.b32.xlu0 %v109, 96
    %v736 = vpop.permute.xlu0 %735
    %v739 = vsel %vm120, %v732, 0
    %741 = vmatpush.msra.mxu0 0.0
    %742 = vmatpush.msra.mxu0 0.0
    %743 = vmatpush.msra.mxu0 0.0
    %744 = vmatpush.msra.mxu0 0.0
    %745 = vmatpush.msra.mxu0 0.0
    %746 = vmatpush.msra.mxu0 0.0
    %747 = vmatpush.msra.mxu0 0.0
    %748 = vmatpush.msra.mxu0 0.0
    %749 = vmatpush.msra.mxu0 0.0
    %750 = vmatpush.msra.mxu0 0.0
    %751 = vmatpush.msra.mxu0 0.0
    %752 = vmatpush.msra.mxu0 0.0
    %753 = vmatpush.msra.mxu0 0.0
    %754 = vmatpush.msra.mxu0 0.0
    %755 = vmatpush.msra.mxu0 0.0
    %756 = vmatpush.msra.mxu0 %v736
    %757 = vmatmul.f32.gmra.mxu0 %v739
    %v758 = vpop.f32.mrf.mxu0
    %v759 = vadd.f32 0.0, %v758
    %760 = vdwg.mxu0
    %762 = vrot.lane.b32.xlu0 %v112, 96
    %v763 = vpop.permute.xlu0 %762
    %v766 = vsel %vm120, %v733, 0
    %768 = vmatpush.msra.mxu0 0.0
    %769 = vmatpush.msra.mxu0 0.0
    %770 = vmatpush.msra.mxu0 0.0
    %771 = vmatpush.msra.mxu0 0.0
    %772 = vmatpush.msra.mxu0 0.0
    %773 = vmatpush.msra.mxu0 0.0
    %774 = vmatpush.msra.mxu0 0.0
    %775 = vmatpush.msra.mxu0 0.0
    %776 = vmatpush.msra.mxu0 0.0
    %777 = vmatpush.msra.mxu0 0.0
    %778 = vmatpush.msra.mxu0 0.0
    %779 = vmatpush.msra.mxu0 0.0
    %780 = vmatpush.msra.mxu0 0.0
    %781 = vmatpush.msra.mxu0 0.0
    %782 = vmatpush.msra.mxu0 0.0
    %783 = vmatpush.msra.mxu0 %v763
    %784 = vmatmul.f32.gmra.mxu0 %v766
    %v785 = vpop.f32.mrf.mxu0
    %v786 = vadd.f32 0.0, %v785
    %787 = vdwg.mxu0
    %s788 = scalar_lea.vmem %s13, 48
    %v789 = vld [vmem:[%s788] sm:$0xff]
    %v790 = vld [vmem:[%s788 + $0x8] sm:$0xff]
    %v791 = vmul.f32 %v759, %v114
    %v792 = vmul.f32 %v786, %v114
    %v794 = vsel %vm120, %v789, 0
    %796 = vmatpush.msra.mxu0 0.0
    %797 = vmatpush.msra.mxu0 0.0
    %798 = vmatpush.msra.mxu0 0.0
    %799 = vmatpush.msra.mxu0 0.0
    %800 = vmatpush.msra.mxu0 0.0
    %801 = vmatpush.msra.mxu0 0.0
    %802 = vmatpush.msra.mxu0 0.0
    %803 = vmatpush.msra.mxu0 0.0
    %804 = vmatpush.msra.mxu0 0.0
    %805 = vmatpush.msra.mxu0 0.0
    %806 = vmatpush.msra.mxu0 0.0
    %807 = vmatpush.msra.mxu0 0.0
    %808 = vmatpush.msra.mxu0 0.0
    %809 = vmatpush.msra.mxu0 0.0
    %810 = vmatpush.msra.mxu0 0.0
    %811 = vmatpush.msra.mxu0 %v791
    %812 = vmatmul.f32.gmra.mxu0 %v794
    %v813 = vpop.f32.mrf.mxu0
    %v814 = vadd.f32 0.0, %v813
    %815 = vdwg.mxu0
    %v817 = vsel %vm120, %v790, 0
    %819 = vmatpush.msra.mxu0 0.0
    %820 = vmatpush.msra.mxu0 0.0
    %821 = vmatpush.msra.mxu0 0.0
    %822 = vmatpush.msra.mxu0 0.0
    %823 = vmatpush.msra.mxu0 0.0
    %824 = vmatpush.msra.mxu0 0.0
    %825 = vmatpush.msra.mxu0 0.0
    %826 = vmatpush.msra.mxu0 0.0
    %827 = vmatpush.msra.mxu0 0.0
    %828 = vmatpush.msra.mxu0 0.0
    %829 = vmatpush.msra.mxu0 0.0
    %830 = vmatpush.msra.mxu0 0.0
    %831 = vmatpush.msra.mxu0 0.0
    %832 = vmatpush.msra.mxu0 0.0
    %833 = vmatpush.msra.mxu0 0.0
    %834 = vmatpush.msra.mxu0 %v792
    %835 = vmatmul.f32.gmra.mxu0 %v817
    %v836 = vpop.f32.mrf.mxu0
    %v837 = vadd.f32 0.0, %v836
    %838 = vdwg.mxu0
    %v839 = vadd.f32 %v654, %v814
    %v840 = vadd.f32 %v655, %v837
    %v841 = vld [vmem:[%s3] sm:$0xff]
    %v842 = vld [vmem:[%s3 + $0x8] sm:$0xff]
    %v843 = vld [vmem:[%s3 + $0x10] sm:$0xff]
    %v844 = vld [vmem:[%s3 + $0x18] sm:$0xff]
    %v846 = vsel %vm61, %v839, 0
    %v849 = vsel %vm61, %v840, 0
    %851 = vmatpush.msra.mxu0 0.0
    %852 = vmatpush.msra.mxu0 0.0
    %853 = vmatpush.msra.mxu0 0.0
    %854 = vmatpush.msra.mxu0 0.0
    %855 = vmatpush.msra.mxu0 0.0
    %856 = vmatpush.msra.mxu0 0.0
    %857 = vmatpush.msra.mxu0 0.0
    %858 = vmatpush.msra.mxu0 0.0
    %859 = vmatpush.msra.mxu0 0.0
    %860 = vmatpush.msra.mxu0 0.0
    %861 = vmatpush.msra.mxu0 0.0
    %862 = vmatpush.msra.mxu0 0.0
    %863 = vmatpush.msra.mxu0 %v844
    %864 = vmatpush.msra.mxu0 %v843
    %865 = vmatpush.msra.mxu0 %v842
    %866 = vmatpush.msra.mxu0 %v841
    %867 = vmatmul.f32.gmra.mxu0 %v846
    %v868 = vpop.f32.mrf.mxu0
    %v869 = vadd.f32 0.0, %v868
    %870 = vmatmul.f32.gmra.mxu0 %v849
    %v871 = vpop.f32.mrf.mxu0
    %v872 = vadd.f32 0.0, %v871
    %873 = vdwg.mxu0
    %v874 = vadd.f32 %v51, %v869
    %v875 = vadd.f32 %v52, %v872
    %v876 = vld [vmem:[%s8] sm:$0x1]
    %v877 = vld [vmem:[%s9] sm:$0x1]
    %v878 = vsel %vm61, %v874, 0.0
    %879 = vadd.xlane.f32.xlu0 %v878
    %v880 = vpop.xlane.xlu0 %879
    %v881 = vsel %vm61, %v875, 0.0
    %882 = vadd.xlane.f32.xlu0 %v881
    %v883 = vpop.xlane.xlu0 %882
    %v884 = vrcp.pop 32.0
    %v885 = vmul.f32 32.0, %v884
    %v886 = vsub.f32 1.0, %v885
    %v887 = vmul.f32 %v884, %v886
    %v888 = vadd.f32 %v884, %v887
    %vm889 = vweird.f32 %v884
    %v890 = vsel %vm889, %v884, %v888
    %v891 = vmul.f32 %v880, %v890
    %v892 = vmul.f32 %v883, %v890
    %v893 = vsub.f32 %v874, %v891
    %v894 = vsub.f32 %v875, %v892
    %v895 = vmul.f32 %v893, %v893
    %v896 = vmul.f32 %v894, %v894
    %v897 = vsel %vm61, %v895, 0.0
    %898 = vadd.xlane.f32.xlu0 %v897
    %v899 = vpop.xlane.xlu0 %898
    %v900 = vsel %vm61, %v896, 0.0
    %901 = vadd.xlane.f32.xlu0 %v900
    %v902 = vpop.xlane.xlu0 %901
    %v903 = vmul.f32 %v899, %v890
    %v904 = vmul.f32 %v902, %v890
    %v905 = vadd.f32 %v903, 1e-05
    %v906 = vadd.f32 %v904, 1e-05
    %v907 = vrsqrt.pop %v905
    %v908 = vmul.f32 %v907, %v905
    %v909 = vmul.f32 %v908, %v907
    %v910 = vmul.f32 0.5, %v909
    %v911 = vsub.f32 1.5, %v910
    %v912 = vmul.f32 %v907, %v911
    %vm913 = vweird.f32 %v905
    %vm914 = vweird.f32 %v907
    %vm915 = vmor %vm913, %vm914
    %v916 = vsel %vm915, %v907, %v912
    %v917 = vrsqrt.pop %v906
    %v918 = vmul.f32 %v917, %v906
    %v919 = vmul.f32 %v918, %v917
    %v920 = vmul.f32 0.5, %v919
    %v921 = vsub.f32 1.5, %v920
    %v922 = vmul.f32 %v917, %v921
    %vm923 = vweird.f32 %v906
    %vm924 = vweird.f32 %v917
    %vm925 = vmor %vm923, %vm924
    %v926 = vsel %vm925, %v917, %v922
    %v927 = vmul.f32 %v893, %v916
    %v928 = vmul.f32 %v894, %v926
    %v930 = vperm.slane %v876, 0
    %v932 = vmul.f32 %v927, %v930
    %v933 = vmul.f32 %v928, %v930
    %v935 = vperm.slane %v877, 0
    %v937 = vadd.f32 %v932, %v935
    %v938 = vadd.f32 %v933, %v935
    %v939 = vld [vmem:[%s4] sm:$0xff]
    %v940 = vld [vmem:[%s4 + $0x8] sm:$0xff]
    %v941 = vld [vmem:[%s4 + $0x10] sm:$0xff]
    %v942 = vld [vmem:[%s4 + $0x18] sm:$0xff]
    %v943 = vld [vmem:[%s5] sm:$0x1]
    %v945 = vperm.slane %v943, 0
    %v948 = vsel %vm61, %v937, 0
    %v951 = vsel %vm61, %v938, 0
    %953 = vmatpush.msra.mxu0 0.0
    %954 = vmatpush.msra.mxu0 0.0
    %955 = vmatpush.msra.mxu0 0.0
    %956 = vmatpush.msra.mxu0 0.0
    %957 = vmatpush.msra.mxu0 0.0
    %958 = vmatpush.msra.mxu0 0.0
    %959 = vmatpush.msra.mxu0 0.0
    %960 = vmatpush.msra.mxu0 0.0
    %961 = vmatpush.msra.mxu0 0.0
    %962 = vmatpush.msra.mxu0 0.0
    %963 = vmatpush.msra.mxu0 0.0
    %964 = vmatpush.msra.mxu0 0.0
    %965 = vmatpush.msra.mxu0 %v942
    %966 = vmatpush.msra.mxu0 %v941
    %967 = vmatpush.msra.mxu0 %v940
    %968 = vmatpush.msra.mxu0 %v939
    %969 = vmatmul.f32.gmra.mxu0 %v948
    %v970 = vpop.f32.mrf.mxu0
    %v971 = vadd.f32 %v945, %v970
    %972 = vmatmul.f32.gmra.mxu0 %v951
    %v973 = vpop.f32.mrf.mxu0
    %v974 = vadd.f32 %v945, %v973
    %975 = vdwg.mxu0
    %v976 = vld [vmem:[%s6] sm:$0xff]
    %v977 = vld [vmem:[%s6 + $0x8] sm:$0xff]
    %v978 = vld [vmem:[%s6 + $0x10] sm:$0xff]
    %v979 = vld [vmem:[%s6 + $0x18] sm:$0xff]
    %v980 = vld [vmem:[%s6 + $0x20] sm:$0xff]
    %v981 = vld [vmem:[%s6 + $0x28] sm:$0xff]
    %v982 = vld [vmem:[%s6 + $0x30] sm:$0xff]
    %v983 = vld [vmem:[%s6 + $0x38] sm:$0xff]
    %v984 = vld [vmem:[%s7] sm:$0x1]
    %v986 = vperm.slane %v984, 0
    %vm988 = vcmask 523264
    %v990 = vsel %vm988, %v971, 0
    %v993 = vsel %vm988, %v974, 0
    %995 = vmatpush.msra.mxu0 0.0
    %996 = vmatpush.msra.mxu0 0.0
    %997 = vmatpush.msra.mxu0 0.0
    %998 = vmatpush.msra.mxu0 0.0
    %999 = vmatpush.msra.mxu0 0.0
    %1000 = vmatpush.msra.mxu0 0.0
    %1001 = vmatpush.msra.mxu0 0.0
    %1002 = vmatpush.msra.mxu0 0.0
    %1003 = vmatpush.msra.mxu0 %v983
    %1004 = vmatpush.msra.mxu0 %v982
    %1005 = vmatpush.msra.mxu0 %v981
    %1006 = vmatpush.msra.mxu0 %v980
    %1007 = vmatpush.msra.mxu0 %v979
    %1008 = vmatpush.msra.mxu0 %v978
    %1009 = vmatpush.msra.mxu0 %v977
    %1010 = vmatpush.msra.mxu0 %v976
    %1011 = vmatmul.f32.gmra.mxu0 %v990
    %v1012 = vpop.f32.mrf.mxu0
    %v1013 = vadd.f32 %v986, %v1012
    %1014 = vmatmul.f32.gmra.mxu0 %v993
    %v1015 = vpop.f32.mrf.mxu0
    %v1016 = vadd.f32 %v986, %v1015
    %1017 = vdwg.mxu0
    %v1018 = vadd.f32 %v1013, %v937
    %v1019 = vadd.f32 %v1016, %v938
    %v1020 = vld [vmem:[%s10] sm:$0x1]
    %v1021 = vld [vmem:[%s11] sm:$0x1]
    %v1022 = vsel %vm61, %v1018, 0.0
    %1023 = vadd.xlane.f32.xlu0 %v1022
    %v1024 = vpop.xlane.xlu0 %1023
    %v1025 = vsel %vm61, %v1019, 0.0
    %1026 = vadd.xlane.f32.xlu0 %v1025
    %v1027 = vpop.xlane.xlu0 %1026
    %v1028 = vmul.f32 %v1024, %v890
    %v1029 = vmul.f32 %v1027, %v890
    %v1030 = vsub.f32 %v1018, %v1028
    %v1031 = vsub.f32 %v1019, %v1029
    %v1032 = vmul.f32 %v1030, %v1030
    %v1033 = vmul.f32 %v1031, %v1031
    %v1034 = vsel %vm61, %v1032, 0.0
    %1035 = vadd.xlane.f32.xlu0 %v1034
    %v1036 = vpop.xlane.xlu0 %1035
    %v1037 = vsel %vm61, %v1033, 0.0
    %1038 = vadd.xlane.f32.xlu0 %v1037
    %v1039 = vpop.xlane.xlu0 %1038
    %v1040 = vmul.f32 %v1036, %v890
    %v1041 = vmul.f32 %v1039, %v890
    %v1042 = vadd.f32 %v1040, 1e-05
    %v1043 = vadd.f32 %v1041, 1e-05
    %v1044 = vrsqrt.pop %v1042
    %v1045 = vmul.f32 %v1044, %v1042
    %v1046 = vmul.f32 %v1045, %v1044
    %v1047 = vmul.f32 0.5, %v1046
    %v1048 = vsub.f32 1.5, %v1047
    %v1049 = vmul.f32 %v1044, %v1048
    %vm1050 = vweird.f32 %v1042
    %vm1051 = vweird.f32 %v1044
    %vm1052 = vmor %vm1050, %vm1051
    %v1053 = vsel %vm1052, %v1044, %v1049
    %v1054 = vrsqrt.pop %v1043
    %v1055 = vmul.f32 %v1054, %v1043
    %v1056 = vmul.f32 %v1055, %v1054
    %v1057 = vmul.f32 0.5, %v1056
    %v1058 = vsub.f32 1.5, %v1057
    %v1059 = vmul.f32 %v1054, %v1058
    %vm1060 = vweird.f32 %v1043
    %vm1061 = vweird.f32 %v1054
    %vm1062 = vmor %vm1060, %vm1061
    %v1063 = vsel %vm1062, %v1054, %v1059
    %v1064 = vmul.f32 %v1030, %v1053
    %v1065 = vmul.f32 %v1031, %v1063
    %v1067 = vperm.slane %v1020, 0
    %v1069 = vmul.f32 %v1064, %v1067
    %v1070 = vmul.f32 %v1065, %v1067
    %v1072 = vperm.slane %v1021, 0
    %v1074 = vadd.f32 %v1069, %v1072
    %v1075 = vadd.f32 %v1070, %v1072
    %1076 = vst.msk [vmem:[#allocation2] sm:$0xff] %vm61, %v1074
    %1077 = vst.msk [vmem:[#allocation2 + $0x8] sm:$0xff] %vm61, %v1075
    // Predicated region
    $region58: #{encoder_layer.1} parent=1 // pred_check
      _
    $region59: #{encoder_layer.1} parent=1 // pred_check_branch
      %1079 = sbr.rel (0) target = $region61
    $region60: #{encoder_layer.1} parent=1 // pred_region
      %1081 = vsyncadd [#allocation3], 0
      %s1082 = sshll.u32 [#allocation2], 4
      %s1083 = int_to_ptr.vmem [resolvable:$true] %s1082
      %s1084 = sshll.u32 %s14, 4
      %s1085 = int_to_ptr.hbm [resolvable:$true] %s1084
      %1090 = dma.vmem_to_hbm [thread:$0]  %s1083, 256, %s1085, [#allocation3], 128, 128, 8
    $region61: #{encoder_layer.1} parent=1 // pred_fallthru
      _
    // Predicated region
    $region62: #{encoder_layer.1} parent=1 // pred_check
      _
    $region63: #{encoder_layer.1} parent=1 // pred_check_branch
      %1092 = sbr.rel (0) target = $region65
    $region64: #{encoder_layer.1} parent=1 // pred_region
      %1094 = dma.done [#allocation3], 256
    $region65: #{encoder_layer.1} parent=1 // pred_fallthru
      _
    %1095 = vsyncpa [#allocation3], 1

</llo_original>
